<compile_context>
chip_gen: v7x
topology: tpu7x:2x2x1
jax: 0.10.0
libtpu: 0.0.40
codegen_flags: <defaults>
</compile_context>

<pallas_src>
import functools

import jax
import jax.numpy as jnp
from jax.experimental import pallas as pl
from jax.experimental.pallas import tpu as pltpu

BN_EPS = 1e-5          # PyTorch BatchNorm1d default eps
LANE = 128             # TPU lane width


def _round_up(x, m):
    return (x + m - 1) // m * m


def _bf16_dot(a, w):
    """MXU policy used everywhere: bf16 operands, f32 accumulation."""
    return jnp.dot(a.astype(jnp.bfloat16), w.astype(jnp.bfloat16),
                   preferred_element_type=jnp.float32)


# ----------------------------------------------------------------------------
# Fused single-kernel forward (whole batch resident in VMEM)
# ----------------------------------------------------------------------------
def _fused_forward_kernel(x_ref, gamma_ref, beta_ref, *refs,
                          nb_layer, n_rows, n_inv):
    """Entire forward in one kernel; activations stay resident in VMEM.

    refs = [w_0, b_0, ..., w_{L-1}, b_{L-1}, w_pen, b_pen, w_emb, b_emb, out]
    """
    out_ref = refs[-1]
    wp_ref, bp_ref, we_ref, be_ref = refs[2 * nb_layer: 2 * nb_layer + 4]

    gamma = gamma_ref[...]
    beta = beta_ref[...]

    # Padded rows must not contribute to the BatchNorm batch statistics.
    rows = jax.lax.broadcasted_iota(jnp.int32, (x_ref.shape[0], 1), 0)
    valid = (rows < n_rows).astype(jnp.float32)

    h = x_ref[...].astype(jnp.bfloat16)
    for l in range(nb_layer):                        # unrolled at trace time
        w_ref, b_ref = refs[2 * l], refs[2 * l + 1]
        a = jnp.tanh(jnp.dot(h, w_ref[...],
                             preferred_element_type=jnp.float32) + b_ref[...])
        # training-mode BatchNorm1d: batch mean / biased variance over valid
        # rows, centered (two-pass) variance for numerical stability.
        mean = jnp.sum(a * valid, axis=0, keepdims=True) * n_inv
        d = (a - mean) * valid
        var = jnp.sum(d * d, axis=0, keepdims=True) * n_inv
        hn = (a - mean) * jax.lax.rsqrt(var + BN_EPS) * gamma + beta
        h = hn.astype(jnp.bfloat16)                  # bf16 operand for next MXU op

    hp = jnp.tanh(jnp.dot(h, wp_ref[...],
                          preferred_element_type=jnp.float32) + bp_ref[...])
    out_ref[...] = jnp.dot(hp.astype(jnp.bfloat16), we_ref[...],
                           preferred_element_type=jnp.float32) + be_ref[...]


# ----------------------------------------------------------------------------
# Multi-tile fallback: per-layer kernels (BN folded into weights in JAX)
# ----------------------------------------------------------------------------
def _hidden_layer_kernel(x_ref, w_ref, b_ref, h_ref, sum_ref, m2_ref, *,
                         n_rows, tile_rows):
    """h = tanh(x @ W' + b'); emit per-tile BN partials (sum, centered M2)."""
    a = jnp.tanh(jnp.dot(x_ref[...], w_ref[...],
                         preferred_element_type=jnp.float32) + b_ref[...])
    h_ref[...] = a.astype(h_ref.dtype)               # bf16 activations to HBM

    n_valid = n_rows - pl.program_id(0) * tile_rows  # valid rows in this tile

    @pl.when(n_valid >= tile_rows)                   # interior tile: no padding
    def _():
        s = jnp.sum(a, axis=0, keepdims=True)
        d = a - s * (1.0 / tile_rows)
        sum_ref[...] = s[None]
        m2_ref[...] = jnp.sum(d * d, axis=0, keepdims=True)[None]

    @pl.when(n_valid < tile_rows)                    # last tile: mask pad rows
    def _():
        ridx = jax.lax.broadcasted_iota(jnp.int32, a.shape, 0)
        valid = (ridx < n_valid).astype(jnp.float32)
        am = a * valid
        s = jnp.sum(am, axis=0, keepdims=True)
        cnt = jnp.maximum(n_valid, 1).astype(jnp.float32)
        d = (a - s / cnt) * valid
        sum_ref[...] = s[None]
        m2_ref[...] = jnp.sum(d * d, axis=0, keepdims=True)[None]


def _head_kernel(x_ref, wp_ref, bp_ref, we_ref, be_ref, out_ref):
    """out = tanh(x @ Wp' + bp') @ We_pad + be_pad (lane-dense output)."""
    hp = jnp.tanh(jnp.dot(x_ref[...], wp_ref[...],
                          preferred_element_type=jnp.float32) + bp_ref[...])
    out_ref[...] = jnp.dot(hp.astype(jnp.bfloat16), we_ref[...],
                           preferred_element_type=jnp.float32) + be_ref[...]


def _hidden_layer_call(x, w, b, n_rows, tile_rows):
    r_pad, d_in = x.shape
    d_out = w.shape[1]
    grid_r = r_pad // tile_rows
    kernel = functools.partial(_hidden_layer_kernel,
                               n_rows=n_rows, tile_rows=tile_rows)
    h, sums, m2s = pl.pallas_call(
        kernel,
        out_shape=(jax.ShapeDtypeStruct((r_pad, d_out), jnp.bfloat16),
                   jax.ShapeDtypeStruct((grid_r, 1, d_out), jnp.float32),
                   jax.ShapeDtypeStruct((grid_r, 1, d_out), jnp.float32)),
        grid=(grid_r,),
        in_specs=[pl.BlockSpec((tile_rows, d_in), lambda i: (i, 0)),
                  pl.BlockSpec((d_in, d_out), lambda i: (0, 0)),
                  pl.BlockSpec((1, d_out), lambda i: (0, 0))],
        out_specs=(pl.BlockSpec((tile_rows, d_out), lambda i: (i, 0)),
                   pl.BlockSpec((1, 1, d_out), lambda i: (i, 0, 0)),
                   pl.BlockSpec((1, 1, d_out), lambda i: (i, 0, 0))),
        compiler_params=pltpu.CompilerParams(
            dimension_semantics=("parallel",), vmem_limit_bytes=64 << 20),
    )(x, w, b)
    return h, sums[:, 0, :], m2s[:, 0, :]


def _head_call(x, wp, bp, we, be, tile_rows):
    r_pad, d_in = x.shape
    d_out = we.shape[1]
    grid_r = r_pad // tile_rows
    return pl.pallas_call(
        _head_kernel,
        out_shape=jax.ShapeDtypeStruct((r_pad, d_out), jnp.float32),
        grid=(grid_r,),
        in_specs=[pl.BlockSpec((tile_rows, d_in), lambda i: (i, 0)),
                  pl.BlockSpec((d_in, d_in), lambda i: (0, 0)),
                  pl.BlockSpec((1, d_in), lambda i: (0, 0)),
                  pl.BlockSpec((d_in, d_out), lambda i: (0, 0)),
                  pl.BlockSpec((1, d_out), lambda i: (0, 0))],
        out_specs=pl.BlockSpec((tile_rows, d_out), lambda i: (i, 0)),
        compiler_params=pltpu.CompilerParams(
            dimension_semantics=("parallel",), vmem_limit_bytes=64 << 20),
    )(x, wp, bp, we, be)


def _bn_scale_shift(sums, m2s, counts, n_rows, gamma, beta):
    """Combine per-tile (sum, centered M2) partials -> training-BN scale/shift."""
    mean_t = sums / counts[:, None]
    mean = jnp.sum(sums, axis=0) / n_rows
    m2 = (jnp.sum(m2s, axis=0)
          + jnp.sum(counts[:, None] * (mean_t - mean) ** 2, axis=0))
    var = m2 / n_rows                                # biased (training) variance
    scale = gamma / jnp.sqrt(var + BN_EPS)
    shift = beta - mean * scale
    return scale, shift


def _fold_affine(scale, shift, w_f32, b_f32):
    """Fold per-feature input affine into the next Linear: (x*s+t)@W = x@(s*W)+t@W+b."""
    w = (scale[:, None] * w_f32).astype(jnp.bfloat16)
    b = shift[None, :] @ w_f32 + b_f32
    return w, b


# ----------------------------------------------------------------------------
# Model
# ----------------------------------------------------------------------------
def _linear_init(key, din, dout):
    """PyTorch nn.Linear default init: U(-1/sqrt(fan_in), 1/sqrt(fan_in))."""
    k1, k2 = jax.random.split(key)
    bound = float(din) ** -0.5
    w = jax.random.uniform(k1, (din, dout), jnp.float32, -bound, bound)
    b = jax.random.uniform(k2, (1, dout), jnp.float32, -bound, bound)
    return w, b


class BatchNormEmbeddingPallas:
    def __init__(self, in_channels, emb_hidden, nb_layer, emb_dim=3, key=None):
        H = emb_hidden
        HP = _round_up(H, LANE)                # lane-dense hidden width
        EP = _round_up(emb_dim, LANE)          # lane-dense head output width
        self.emb_dim, self.nb_layer = emb_dim, nb_layer
        self.h_pad, self.out_pad = HP, EP

        keys = jax.random.split(key, nb_layer + 2)
        dims = [in_channels] + [H] * nb_layer

        # raw (PyTorch-default) params, kept unpadded for the pure-JAX reference
        self.ref_layers = [_linear_init(keys[i], dims[i], dims[i + 1])
                           for i in range(nb_layer)]
        self.ref_wp, self.ref_bp = _linear_init(keys[nb_layer], H, H)
        self.ref_we, self.ref_be = _linear_init(keys[nb_layer + 1], H, emb_dim)

        # zero-padded, lane-dense copies used by the kernels
        def pad2(a, r, c):
            return jnp.zeros((r, c), jnp.float32).at[:a.shape[0], :a.shape[1]].set(a)

        self.layers_f32 = []
        for i, (w, b) in enumerate(self.ref_layers):
            din_p = in_channels if i == 0 else HP
            self.layers_f32.append((pad2(w, din_p, HP), pad2(b, 1, HP)))
        self.wp_f32, self.bp_f32 = pad2(self.ref_wp, HP, HP), pad2(self.ref_bp, 1, HP)
        self.we_f32, self.be_f32 = pad2(self.ref_we, HP, EP), pad2(self.ref_be, 1, EP)

        # pre-cast bf16 weights once (never re-converted per grid step in-kernel)
        self.layers_bf16 = [(w.astype(jnp.bfloat16), b) for (w, b) in self.layers_f32]
        self.wp_bf16 = self.wp_f32.astype(jnp.bfloat16)
        self.we_bf16 = self.we_f32.astype(jnp.bfloat16)

        # BatchNorm1d affine (defaults gamma=1, beta=0); padded lanes get 0.
        self.gamma = jnp.zeros((1, HP), jnp.float32).at[:, :H].set(1.0)
        self.beta = jnp.zeros((1, HP), jnp.float32)

        wb = sum(w.size * 2 + b.size * 4 for (w, b) in self.layers_bf16)
        wb += (self.wp_bf16.size + self.we_bf16.size) * 2
        wb += (self.bp_f32.size + self.be_f32.size + 2 * HP) * 4
        self._weight_bytes = wb

    # ---- Pallas forward -----------------------------------------------------
    def __call__(self, x, tile_rows=512, max_fused_rows=4096):
        n, d_in = x.shape
        r8 = _round_up(n, 8)

        # fused single-kernel path: whole batch + weights resident in VMEM
        act_bytes = r8 * (d_in * 4 + 4 * self.h_pad * 4 + self.out_pad * 4)
        if r8 <= max_fused_rows and act_bytes + self._weight_bytes < (24 << 20):
            x_pad = jnp.pad(x, ((0, r8 - n), (0, 0)))
            out = self._fused_forward(x_pad, n)
            return out[:n, :self.emb_dim]

        # multi-tile fallback: per-layer kernels, BN folded into next weights.
        # (On v7x the row tiles are sharded across the 2 TensorCores via the
        #  "parallel" grid axis.)
        tile = _round_up(min(tile_rows, _round_up(n, 16)), 16)
        r_pad = _round_up(n, tile)
        grid_r = r_pad // tile
        x_pad = jnp.pad(x, ((0, r_pad - n), (0, 0))).astype(jnp.bfloat16)
        counts = jnp.array([min(tile, n - i * tile) for i in range(grid_r)],
                           jnp.float32)
        gamma, beta = self.gamma[0], self.beta[0]

        h = x_pad
        w_cur, b_cur = self.layers_bf16[0][0], self.layers_f32[0][1]
        for l in range(self.nb_layer):
            h, sums, m2s = _hidden_layer_call(h, w_cur, b_cur, n, tile)
            scale, shift = _bn_scale_shift(sums, m2s, counts, n, gamma, beta)
            w_next, b_next = (self.layers_f32[l + 1] if l + 1 < self.nb_layer
                              else (self.wp_f32, self.bp_f32))
            w_cur, b_cur = _fold_affine(scale, shift, w_next, b_next)

        out = _head_call(h, w_cur, b_cur, self.we_bf16, self.be_f32, tile)
        return out[:n, :self.emb_dim]

    def _fused_forward(self, x_pad, n_rows):
        args = [x_pad, self.gamma, self.beta]
        for (w, b) in self.layers_bf16:
            args += [w, b]
        args += [self.wp_bf16, self.bp_f32, self.we_bf16, self.be_f32]
        kernel = functools.partial(_fused_forward_kernel,
                                   nb_layer=self.nb_layer, n_rows=n_rows,
                                   n_inv=1.0 / n_rows)
        return pl.pallas_call(
            kernel,
            out_shape=jax.ShapeDtypeStruct((x_pad.shape[0], self.out_pad),
                                           jnp.float32),
            compiler_params=pltpu.CompilerParams(vmem_limit_bytes=64 << 20),
        )(*args)

    # ---- pure-JAX reference (same bf16-operand / f32-accum matmul policy) ---
    def reference(self, x):
        h = x
        for (w, b) in self.ref_layers:
            h = jnp.tanh(_bf16_dot(h, w) + b)
            mean = h.mean(0, keepdims=True)
            var = ((h - mean) ** 2).mean(0, keepdims=True)   # biased (training BN)
            h = (h - mean) / jnp.sqrt(var + BN_EPS)          # gamma=1, beta=0
        h = jnp.tanh(_bf16_dot(h, self.ref_wp) + self.ref_bp)
        return _bf16_dot(h, self.ref_we) + self.ref_be


# ----------------------------------------------------------------------------
if __name__ == "__main__":
    key = jax.random.PRNGKey(0)
    N, in_channels, emb_hidden, nb_layer, emb_dim = 250, 4, 32, 3, 3

    kx, kp = jax.random.split(key)
    x = jax.random.normal(kx, (N, in_channels), jnp.float32)
    model = BatchNormEmbeddingPallas(in_channels, emb_hidden, nb_layer,
                                     emb_dim=emb_dim, key=kp)
    ref = model.reference(x)

    # 1) fused single-kernel path (default at these sizes)
    out = jax.block_until_ready(model(x))
    assert out.shape == (N, emb_dim), out.shape
    err = float(jnp.max(jnp.abs(out - ref)))
    assert jnp.allclose(out, ref, rtol=1e-2, atol=1e-2), err

    # 2) multi-tile fallback path (forced; exercises per-layer kernels, masked
    #    partial stats and the cross-tile BN combine).  Slightly looser tol:
    #    activations round-trip HBM in bf16 and the BN affine is folded into
    #    bf16 weights -- intentional perf trade-offs of that path.
    out_tiled = jax.block_until_ready(model(x, tile_rows=64, max_fused_rows=0))
    err_t = float(jnp.max(jnp.abs(out_tiled - ref)))
    assert jnp.allclose(out_tiled, ref, rtol=5e-2, atol=5e-2), err_t

    print("KERNEL_OK")
</pallas_src>

<mosaic_0001>
module attributes {stable_mosaic.version = 11 : i64} {
  func.func @_fused_forward_kernel(%arg0: memref<256x4xf32, #tpu.memory_space<vmem>>, %arg1: memref<1x128xf32, #tpu.memory_space<vmem>>, %arg2: memref<1x128xf32, #tpu.memory_space<vmem>>, %arg3: memref<4x128xbf16, #tpu.memory_space<vmem>>, %arg4: memref<1x128xf32, #tpu.memory_space<vmem>>, %arg5: memref<128x128xbf16, #tpu.memory_space<vmem>>, %arg6: memref<1x128xf32, #tpu.memory_space<vmem>>, %arg7: memref<128x128xbf16, #tpu.memory_space<vmem>>, %arg8: memref<1x128xf32, #tpu.memory_space<vmem>>, %arg9: memref<128x128xbf16, #tpu.memory_space<vmem>>, %arg10: memref<1x128xf32, #tpu.memory_space<vmem>>, %arg11: memref<128x128xbf16, #tpu.memory_space<vmem>>, %arg12: memref<1x128xf32, #tpu.memory_space<vmem>>, %arg13: memref<256x128xf32, #tpu.memory_space<vmem>>) attributes {dimension_semantics = [], scalar_prefetch = 0 : i64, scratch_operands = 0 : i64, tpu.core_type = #tpu.core_type<tc>} {
    %c0 = arith.constant 0 : index
    %c0_0 = arith.constant 0 : index
    %0 = vector.load %arg1[%c0, %c0_0] : memref<1x128xf32, #tpu.memory_space<vmem>>, vector<1x128xf32>
    %c0_1 = arith.constant 0 : index
    %c0_2 = arith.constant 0 : index
    %1 = vector.load %arg2[%c0_1, %c0_2] : memref<1x128xf32, #tpu.memory_space<vmem>>, vector<1x128xf32>
    %2 = tpu.iota {dimensions = array<i32: 0>} : vector<256x1xi32>
    %c250_i32 = arith.constant 250 : i32
    %3 = vector.broadcast %c250_i32 : i32 to vector<256x1xi32>
    %4 = arith.cmpi slt, %2, %3 : vector<256x1xi32>
    %5 = arith.extui %4 : vector<256x1xi1> to vector<256x1xi32>
    %6 = arith.sitofp %5 : vector<256x1xi32> to vector<256x1xf32>
    %c0_3 = arith.constant 0 : index
    %c0_4 = arith.constant 0 : index
    %7 = vector.load %arg0[%c0_3, %c0_4] : memref<256x4xf32, #tpu.memory_space<vmem>>, vector<256x4xf32>
    %8 = arith.truncf %7 : vector<256x4xf32> to vector<256x4xbf16>
    %c0_5 = arith.constant 0 : index
    %c0_6 = arith.constant 0 : index
    %9 = vector.load %arg3[%c0_5, %c0_6] : memref<4x128xbf16, #tpu.memory_space<vmem>>, vector<4x128xbf16>
    %cst = arith.constant dense<0.000000e+00> : vector<256x128xf32>
    %10 = tpu.matmul %8, %9, %cst {dimension_numbers = #tpu.dot_dimension_numbers<[1], [0], [0], [1], [0, 0, 1, 1], [], []>} : vector<256x4xbf16>, vector<4x128xbf16>, vector<256x128xf32> -> vector<256x128xf32>
    %c0_7 = arith.constant 0 : index
    %c0_8 = arith.constant 0 : index
    %11 = vector.load %arg4[%c0_7, %c0_8] : memref<1x128xf32, #tpu.memory_space<vmem>>, vector<1x128xf32>
    %12 = vector.broadcast %11 : vector<1x128xf32> to vector<256x128xf32>
    %13 = arith.addf %10, %12 : vector<256x128xf32>
    %14 = math.tanh %13 : vector<256x128xf32>
    %15 = vector.broadcast %6 : vector<256x1xf32> to vector<256x128xf32>
    %16 = arith.mulf %14, %15 : vector<256x128xf32>
    %cst_9 = arith.constant dense<0.000000e+00> : vector<128xf32>
    %17 = vector.multi_reduction <add>, %16, %cst_9 [0] : vector<256x128xf32> to vector<128xf32>
    %18 = vector.shape_cast %17 : vector<128xf32> to vector<1x128xf32>
    %cst_10 = arith.constant 4.000000e-03 : f32
    %19 = vector.broadcast %cst_10 : f32 to vector<1x128xf32>
    %20 = arith.mulf %18, %19 : vector<1x128xf32>
    %21 = vector.broadcast %20 : vector<1x128xf32> to vector<256x128xf32>
    %22 = arith.subf %14, %21 : vector<256x128xf32>
    %23 = vector.broadcast %6 : vector<256x1xf32> to vector<256x128xf32>
    %24 = arith.mulf %22, %23 : vector<256x128xf32>
    %25 = arith.mulf %24, %24 : vector<256x128xf32>
    %cst_11 = arith.constant dense<0.000000e+00> : vector<128xf32>
    %26 = vector.multi_reduction <add>, %25, %cst_11 [0] : vector<256x128xf32> to vector<128xf32>
    %27 = vector.shape_cast %26 : vector<128xf32> to vector<1x128xf32>
    %cst_12 = arith.constant 4.000000e-03 : f32
    %28 = vector.broadcast %cst_12 : f32 to vector<1x128xf32>
    %29 = arith.mulf %27, %28 : vector<1x128xf32>
    %30 = vector.broadcast %20 : vector<1x128xf32> to vector<256x128xf32>
    %31 = arith.subf %14, %30 : vector<256x128xf32>
    %cst_13 = arith.constant 9.99999974E-6 : f32
    %32 = vector.broadcast %cst_13 : f32 to vector<1x128xf32>
    %33 = arith.addf %29, %32 : vector<1x128xf32>
    %34 = math.rsqrt %33 : vector<1x128xf32>
    %35 = vector.broadcast %34 : vector<1x128xf32> to vector<256x128xf32>
    %36 = arith.mulf %31, %35 : vector<256x128xf32>
    %37 = vector.broadcast %0 : vector<1x128xf32> to vector<256x128xf32>
    %38 = arith.mulf %36, %37 : vector<256x128xf32>
    %39 = vector.broadcast %1 : vector<1x128xf32> to vector<256x128xf32>
    %40 = arith.addf %38, %39 : vector<256x128xf32>
    %41 = arith.truncf %40 : vector<256x128xf32> to vector<256x128xbf16>
    %c0_14 = arith.constant 0 : index
    %c0_15 = arith.constant 0 : index
    %42 = vector.load %arg5[%c0_14, %c0_15] : memref<128x128xbf16, #tpu.memory_space<vmem>>, vector<128x128xbf16>
    %cst_16 = arith.constant dense<0.000000e+00> : vector<256x128xf32>
    %43 = tpu.matmul %41, %42, %cst_16 {dimension_numbers = #tpu.dot_dimension_numbers<[1], [0], [0], [1], [0, 0, 1, 1], [], []>} : vector<256x128xbf16>, vector<128x128xbf16>, vector<256x128xf32> -> vector<256x128xf32>
    %c0_17 = arith.constant 0 : index
    %c0_18 = arith.constant 0 : index
    %44 = vector.load %arg6[%c0_17, %c0_18] : memref<1x128xf32, #tpu.memory_space<vmem>>, vector<1x128xf32>
    %45 = vector.broadcast %44 : vector<1x128xf32> to vector<256x128xf32>
    %46 = arith.addf %43, %45 : vector<256x128xf32>
    %47 = math.tanh %46 : vector<256x128xf32>
    %48 = vector.broadcast %6 : vector<256x1xf32> to vector<256x128xf32>
    %49 = arith.mulf %47, %48 : vector<256x128xf32>
    %cst_19 = arith.constant dense<0.000000e+00> : vector<128xf32>
    %50 = vector.multi_reduction <add>, %49, %cst_19 [0] : vector<256x128xf32> to vector<128xf32>
    %51 = vector.shape_cast %50 : vector<128xf32> to vector<1x128xf32>
    %cst_20 = arith.constant 4.000000e-03 : f32
    %52 = vector.broadcast %cst_20 : f32 to vector<1x128xf32>
    %53 = arith.mulf %51, %52 : vector<1x128xf32>
    %54 = vector.broadcast %53 : vector<1x128xf32> to vector<256x128xf32>
    %55 = arith.subf %47, %54 : vector<256x128xf32>
    %56 = vector.broadcast %6 : vector<256x1xf32> to vector<256x128xf32>
    %57 = arith.mulf %55, %56 : vector<256x128xf32>
    %58 = arith.mulf %57, %57 : vector<256x128xf32>
    %cst_21 = arith.constant dense<0.000000e+00> : vector<128xf32>
    %59 = vector.multi_reduction <add>, %58, %cst_21 [0] : vector<256x128xf32> to vector<128xf32>
    %60 = vector.shape_cast %59 : vector<128xf32> to vector<1x128xf32>
    %cst_22 = arith.constant 4.000000e-03 : f32
    %61 = vector.broadcast %cst_22 : f32 to vector<1x128xf32>
    %62 = arith.mulf %60, %61 : vector<1x128xf32>
    %63 = vector.broadcast %53 : vector<1x128xf32> to vector<256x128xf32>
    %64 = arith.subf %47, %63 : vector<256x128xf32>
    %cst_23 = arith.constant 9.99999974E-6 : f32
    %65 = vector.broadcast %cst_23 : f32 to vector<1x128xf32>
    %66 = arith.addf %62, %65 : vector<1x128xf32>
    %67 = math.rsqrt %66 : vector<1x128xf32>
    %68 = vector.broadcast %67 : vector<1x128xf32> to vector<256x128xf32>
    %69 = arith.mulf %64, %68 : vector<256x128xf32>
    %70 = vector.broadcast %0 : vector<1x128xf32> to vector<256x128xf32>
    %71 = arith.mulf %69, %70 : vector<256x128xf32>
    %72 = vector.broadcast %1 : vector<1x128xf32> to vector<256x128xf32>
    %73 = arith.addf %71, %72 : vector<256x128xf32>
    %74 = arith.truncf %73 : vector<256x128xf32> to vector<256x128xbf16>
    %c0_24 = arith.constant 0 : index
    %c0_25 = arith.constant 0 : index
    %75 = vector.load %arg7[%c0_24, %c0_25] : memref<128x128xbf16, #tpu.memory_space<vmem>>, vector<128x128xbf16>
    %cst_26 = arith.constant dense<0.000000e+00> : vector<256x128xf32>
    %76 = tpu.matmul %74, %75, %cst_26 {dimension_numbers = #tpu.dot_dimension_numbers<[1], [0], [0], [1], [0, 0, 1, 1], [], []>} : vector<256x128xbf16>, vector<128x128xbf16>, vector<256x128xf32> -> vector<256x128xf32>
    %c0_27 = arith.constant 0 : index
    %c0_28 = arith.constant 0 : index
    %77 = vector.load %arg8[%c0_27, %c0_28] : memref<1x128xf32, #tpu.memory_space<vmem>>, vector<1x128xf32>
    %78 = vector.broadcast %77 : vector<1x128xf32> to vector<256x128xf32>
    %79 = arith.addf %76, %78 : vector<256x128xf32>
    %80 = math.tanh %79 : vector<256x128xf32>
    %81 = vector.broadcast %6 : vector<256x1xf32> to vector<256x128xf32>
    %82 = arith.mulf %80, %81 : vector<256x128xf32>
    %cst_29 = arith.constant dense<0.000000e+00> : vector<128xf32>
    %83 = vector.multi_reduction <add>, %82, %cst_29 [0] : vector<256x128xf32> to vector<128xf32>
    %84 = vector.shape_cast %83 : vector<128xf32> to vector<1x128xf32>
    %cst_30 = arith.constant 4.000000e-03 : f32
    %85 = vector.broadcast %cst_30 : f32 to vector<1x128xf32>
    %86 = arith.mulf %84, %85 : vector<1x128xf32>
    %87 = vector.broadcast %86 : vector<1x128xf32> to vector<256x128xf32>
    %88 = arith.subf %80, %87 : vector<256x128xf32>
    %89 = vector.broadcast %6 : vector<256x1xf32> to vector<256x128xf32>
    %90 = arith.mulf %88, %89 : vector<256x128xf32>
    %91 = arith.mulf %90, %90 : vector<256x128xf32>
    %cst_31 = arith.constant dense<0.000000e+00> : vector<128xf32>
    %92 = vector.multi_reduction <add>, %91, %cst_31 [0] : vector<256x128xf32> to vector<128xf32>
    %93 = vector.shape_cast %92 : vector<128xf32> to vector<1x128xf32>
    %cst_32 = arith.constant 4.000000e-03 : f32
    %94 = vector.broadcast %cst_32 : f32 to vector<1x128xf32>
    %95 = arith.mulf %93, %94 : vector<1x128xf32>
    %96 = vector.broadcast %86 : vector<1x128xf32> to vector<256x128xf32>
    %97 = arith.subf %80, %96 : vector<256x128xf32>
    %cst_33 = arith.constant 9.99999974E-6 : f32
    %98 = vector.broadcast %cst_33 : f32 to vector<1x128xf32>
    %99 = arith.addf %95, %98 : vector<1x128xf32>
    %100 = math.rsqrt %99 : vector<1x128xf32>
    %101 = vector.broadcast %100 : vector<1x128xf32> to vector<256x128xf32>
    %102 = arith.mulf %97, %101 : vector<256x128xf32>
    %103 = vector.broadcast %0 : vector<1x128xf32> to vector<256x128xf32>
    %104 = arith.mulf %102, %103 : vector<256x128xf32>
    %105 = vector.broadcast %1 : vector<1x128xf32> to vector<256x128xf32>
    %106 = arith.addf %104, %105 : vector<256x128xf32>
    %107 = arith.truncf %106 : vector<256x128xf32> to vector<256x128xbf16>
    %c0_34 = arith.constant 0 : index
    %c0_35 = arith.constant 0 : index
    %108 = vector.load %arg9[%c0_34, %c0_35] : memref<128x128xbf16, #tpu.memory_space<vmem>>, vector<128x128xbf16>
    %cst_36 = arith.constant dense<0.000000e+00> : vector<256x128xf32>
    %109 = tpu.matmul %107, %108, %cst_36 {dimension_numbers = #tpu.dot_dimension_numbers<[1], [0], [0], [1], [0, 0, 1, 1], [], []>} : vector<256x128xbf16>, vector<128x128xbf16>, vector<256x128xf32> -> vector<256x128xf32>
    %c0_37 = arith.constant 0 : index
    %c0_38 = arith.constant 0 : index
    %110 = vector.load %arg10[%c0_37, %c0_38] : memref<1x128xf32, #tpu.memory_space<vmem>>, vector<1x128xf32>
    %111 = vector.broadcast %110 : vector<1x128xf32> to vector<256x128xf32>
    %112 = arith.addf %109, %111 : vector<256x128xf32>
    %113 = math.tanh %112 : vector<256x128xf32>
    %114 = arith.truncf %113 : vector<256x128xf32> to vector<256x128xbf16>
    %c0_39 = arith.constant 0 : index
    %c0_40 = arith.constant 0 : index
    %115 = vector.load %arg11[%c0_39, %c0_40] : memref<128x128xbf16, #tpu.memory_space<vmem>>, vector<128x128xbf16>
    %cst_41 = arith.constant dense<0.000000e+00> : vector<256x128xf32>
    %116 = tpu.matmul %114, %115, %cst_41 {dimension_numbers = #tpu.dot_dimension_numbers<[1], [0], [0], [1], [0, 0, 1, 1], [], []>} : vector<256x128xbf16>, vector<128x128xbf16>, vector<256x128xf32> -> vector<256x128xf32>
    %c0_42 = arith.constant 0 : index
    %c0_43 = arith.constant 0 : index
    %117 = vector.load %arg12[%c0_42, %c0_43] : memref<1x128xf32, #tpu.memory_space<vmem>>, vector<1x128xf32>
    %118 = vector.broadcast %117 : vector<1x128xf32> to vector<256x128xf32>
    %119 = arith.addf %116, %118 : vector<256x128xf32>
    %c0_44 = arith.constant 0 : index
    %c0_45 = arith.constant 0 : index
    %120 = vector.load %arg13[%c0_44, %c0_45] : memref<256x128xf32, #tpu.memory_space<vmem>>, vector<256x128xf32>
    tpu.vector_store %arg13[%c0_44, %c0_45], %119 {strides = array<i32>} : memref<256x128xf32, #tpu.memory_space<vmem>>, vector<256x128xf32>,
    return
  }
}

</mosaic_0001>

<llo_original>
// kernel: tpu_custom_call.1
$region0: #{tpu_custom_call.1}
  #allocation0 [shape = 'u32[]', space=smem, size = 0x4, offset = 0x4, fixed_abs, tag = 'smem constant byte address 0x4 - core index']
  #allocation1 [shape = 'u32[144,128]{1,0:T(1,128)}', space=vmem, size = 0x12000, scoped, tag = 'internal scratch']
  %s0 = inlined_call_operand.hbm [shape: f32[256,4], index: 0, kind: input, shape index: {}]
  %s1 = inlined_call_operand.hbm [shape: f32[1,128], index: 1, kind: input, shape index: {}]
  %s2 = inlined_call_operand.hbm [shape: f32[1,128], index: 2, kind: input, shape index: {}]
  %s3 = inlined_call_operand.hbm [shape: bf16[4,128], index: 3, kind: input, shape index: {}]
  %s4 = inlined_call_operand.hbm [shape: f32[1,128], index: 4, kind: input, shape index: {}]
  %s5 = inlined_call_operand.hbm [shape: bf16[128,128], index: 5, kind: input, shape index: {}]
  %s6 = inlined_call_operand.hbm [shape: f32[1,128], index: 6, kind: input, shape index: {}]
  %s7 = inlined_call_operand.hbm [shape: bf16[128,128], index: 7, kind: input, shape index: {}]
  %s8 = inlined_call_operand.hbm [shape: f32[1,128], index: 8, kind: input, shape index: {}]
  %s9 = inlined_call_operand.hbm [shape: bf16[128,128], index: 9, kind: input, shape index: {}]
  %s10 = inlined_call_operand.hbm [shape: f32[1,128], index: 10, kind: input, shape index: {}]
  %s11 = inlined_call_operand.hbm [shape: bf16[128,128], index: 11, kind: input, shape index: {}]
  %s12 = inlined_call_operand.hbm [shape: f32[1,128], index: 12, kind: input, shape index: {}]
  %s13 = inlined_call_operand.hbm [shape: f32[256,128], index: 13, kind: output, shape index: {}]
  %s14 = sld [smem:[#allocation0]]
  $region114: #{tpu_custom_call.1} parent=0
    _
  %s16 = ssub.s32 1, %s14
  %s17 = scalar_select 0, %s16, %s14
  $region1: #{tpu_custom_call.1} parent=0
    #allocation2 [shape = 'u8[131072]{0}', space=vmem, size = 0x20000, scoped, tag = 'input window, operand 0, single buffered']
    #allocation3 [shape = 's32[1]{0}', space=sflag, size = 0x4, scoped, tag = 'scoped memory for tpu_custom_call.1']
    #allocation4 [shape = 's32[1]{0}', space=sflag, size = 0x4, scoped, tag = 'scoped memory for tpu_custom_call.1']
    #allocation5 [shape = 'u8[512]{0}', space=vmem, size = 0x400, scoped, tag = 'input window, operand 1, single buffered']
    #allocation6 [shape = 's32[1]{0}', space=sflag, size = 0x4, scoped, tag = 'scoped memory for tpu_custom_call.1']
    #allocation7 [shape = 'u8[512]{0}', space=vmem, size = 0x400, scoped, tag = 'input window, operand 2, single buffered']
    #allocation8 [shape = 'u8[1024]{0}', space=vmem, size = 0x400, scoped, tag = 'input window, operand 3, single buffered']
    #allocation9 [shape = 's32[1]{0}', space=sflag, size = 0x4, scoped, tag = 'scoped memory for tpu_custom_call.1']
    #allocation10 [shape = 'u8[512]{0}', space=vmem, size = 0x400, scoped, tag = 'input window, operand 4, single buffered']
    #allocation11 [shape = 'u8[32768]{0}', space=vmem, size = 0x8000, scoped, tag = 'input window, operand 5, single buffered']
    #allocation12 [shape = 's32[1]{0}', space=sflag, size = 0x4, scoped, tag = 'scoped memory for tpu_custom_call.1']
    #allocation13 [shape = 'u8[512]{0}', space=vmem, size = 0x400, scoped, tag = 'input window, operand 6, single buffered']
    #allocation14 [shape = 'u8[32768]{0}', space=vmem, size = 0x8000, scoped, tag = 'input window, operand 7, single buffered']
    #allocation15 [shape = 's32[1]{0}', space=sflag, size = 0x4, scoped, tag = 'scoped memory for tpu_custom_call.1']
    #allocation16 [shape = 'u8[512]{0}', space=vmem, size = 0x400, scoped, tag = 'input window, operand 8, single buffered']
    #allocation17 [shape = 'u8[32768]{0}', space=vmem, size = 0x8000, scoped, tag = 'input window, operand 9, single buffered']
    #allocation18 [shape = 's32[1]{0}', space=sflag, size = 0x4, scoped, tag = 'scoped memory for tpu_custom_call.1']
    #allocation19 [shape = 'u8[512]{0}', space=vmem, size = 0x400, scoped, tag = 'input window, operand 10, single buffered']
    #allocation20 [shape = 'u8[32768]{0}', space=vmem, size = 0x8000, scoped, tag = 'input window, operand 11, single buffered']
    #allocation21 [shape = 's32[1]{0}', space=sflag, size = 0x4, scoped, tag = 'scoped memory for tpu_custom_call.1']
    #allocation22 [shape = 'u8[512]{0}', space=vmem, size = 0x400, scoped, tag = 'input window, operand 12, single buffered']
    #allocation23 [shape = 'u8[131072]{0}', space=vmem, size = 0x20000, scoped, tag = 'output window, operand 0, single buffered']
    %18 = vsyncpa [#allocation3], 0
    %19 = vsyncpa [#allocation6], 0
    %20 = vsyncpa [#allocation9], 0
    %21 = vsyncpa [#allocation12], 0
    %22 = vsyncpa [#allocation15], 0
    %23 = vsyncpa [#allocation18], 0
    %24 = vsyncpa [#allocation21], 0
    %25 = vsyncpa [#allocation4], 0
    // Predicated region
    $region2: #{tpu_custom_call.1} parent=1 // pred_check
      _
    $region3: #{tpu_custom_call.1} parent=1 // pred_check_branch
      %27 = sbr.rel (0) target = $region5
    $region4: #{tpu_custom_call.1} parent=1 // pred_region
      %s29 = ssub.s32 4096, 4096
      %30 = vsyncadd [#allocation3], %s29
      %s31 = sshll.u32 [#allocation2], 4
      %s32 = int_to_ptr.vmem [resolvable:$true] %s31
      %37 = dma.hbm_to_vmem [thread:$0]  %s0, 4096, %s32, [#allocation3], 128, 128, 8
    $region5: #{tpu_custom_call.1} parent=1 // pred_fallthru
      _
    // Predicated region
    $region6: #{tpu_custom_call.1} parent=1 // pred_check
      _
    $region7: #{tpu_custom_call.1} parent=1 // pred_check_branch
      %39 = sbr.rel (0) target = $region9
    $region8: #{tpu_custom_call.1} parent=1 // pred_region
      %s41 = ssub.s32 16, 16
      %42 = vsyncadd [#allocation6], %s41
      %s44 = sshll.u32 [#allocation5], 4
      %s45 = int_to_ptr.vmem [resolvable:$true] %s44
      %47 = dma.hbm_to_vmem [thread:$0]  %s1, 16, %s45, [#allocation6]
    $region9: #{tpu_custom_call.1} parent=1 // pred_fallthru
      _
    // Predicated region
    $region10: #{tpu_custom_call.1} parent=1 // pred_check
      _
    $region11: #{tpu_custom_call.1} parent=1 // pred_check_branch
      %49 = sbr.rel (0) target = $region13
    $region12: #{tpu_custom_call.1} parent=1 // pred_region
      %s51 = ssub.s32 16, 16
      %52 = vsyncadd [#allocation6], %s51
      %s54 = sshll.u32 [#allocation7], 4
      %s55 = int_to_ptr.vmem [resolvable:$true] %s54
      %57 = dma.hbm_to_vmem [thread:$0]  %s2, 16, %s55, [#allocation6]
    $region13: #{tpu_custom_call.1} parent=1 // pred_fallthru
      _
    // Predicated region
    $region14: #{tpu_custom_call.1} parent=1 // pred_check
      _
    $region15: #{tpu_custom_call.1} parent=1 // pred_check_branch
      %59 = sbr.rel (0) target = $region17
    $region16: #{tpu_custom_call.1} parent=1 // pred_region
      %s61 = ssub.s32 32, 32
      %62 = vsyncadd [#allocation9], %s61
      %s64 = sshll.u32 [#allocation8], 4
      %s65 = int_to_ptr.vmem [resolvable:$true] %s64
      %67 = dma.hbm_to_vmem [thread:$0]  %s3, 32, %s65, [#allocation9]
    $region17: #{tpu_custom_call.1} parent=1 // pred_fallthru
      _
    // Predicated region
    $region18: #{tpu_custom_call.1} parent=1 // pred_check
      _
    $region19: #{tpu_custom_call.1} parent=1 // pred_check_branch
      %69 = sbr.rel (0) target = $region21
    $region20: #{tpu_custom_call.1} parent=1 // pred_region
      %s71 = ssub.s32 16, 16
      %72 = vsyncadd [#allocation9], %s71
      %s74 = sshll.u32 [#allocation10], 4
      %s75 = int_to_ptr.vmem [resolvable:$true] %s74
      %77 = dma.hbm_to_vmem [thread:$0]  %s4, 16, %s75, [#allocation9]
    $region21: #{tpu_custom_call.1} parent=1 // pred_fallthru
      _
    // Predicated region
    $region22: #{tpu_custom_call.1} parent=1 // pred_check
      _
    $region23: #{tpu_custom_call.1} parent=1 // pred_check_branch
      %79 = sbr.rel (0) target = $region25
    $region24: #{tpu_custom_call.1} parent=1 // pred_region
      %s81 = ssub.s32 1024, 1024
      %82 = vsyncadd [#allocation12], %s81
      %s83 = sshll.u32 [#allocation11], 4
      %s84 = int_to_ptr.vmem [resolvable:$true] %s83
      %89 = dma.hbm_to_vmem [thread:$0]  %s5, 1024, %s84, [#allocation12], 64, 64, 4
    $region25: #{tpu_custom_call.1} parent=1 // pred_fallthru
      _
    // Predicated region
    $region26: #{tpu_custom_call.1} parent=1 // pred_check
      _
    $region27: #{tpu_custom_call.1} parent=1 // pred_check_branch
      %91 = sbr.rel (0) target = $region29
    $region28: #{tpu_custom_call.1} parent=1 // pred_region
      %s93 = ssub.s32 16, 16
      %94 = vsyncadd [#allocation12], %s93
      %s96 = sshll.u32 [#allocation13], 4
      %s97 = int_to_ptr.vmem [resolvable:$true] %s96
      %99 = dma.hbm_to_vmem [thread:$0]  %s6, 16, %s97, [#allocation12]
    $region29: #{tpu_custom_call.1} parent=1 // pred_fallthru
      _
    // Predicated region
    $region30: #{tpu_custom_call.1} parent=1 // pred_check
      _
    $region31: #{tpu_custom_call.1} parent=1 // pred_check_branch
      %101 = sbr.rel (0) target = $region33
    $region32: #{tpu_custom_call.1} parent=1 // pred_region
      %s103 = ssub.s32 1024, 1024
      %104 = vsyncadd [#allocation15], %s103
      %s105 = sshll.u32 [#allocation14], 4
      %s106 = int_to_ptr.vmem [resolvable:$true] %s105
      %111 = dma.hbm_to_vmem [thread:$0]  %s7, 1024, %s106, [#allocation15], 64, 64, 4
    $region33: #{tpu_custom_call.1} parent=1 // pred_fallthru
      _
    // Predicated region
    $region34: #{tpu_custom_call.1} parent=1 // pred_check
      _
    $region35: #{tpu_custom_call.1} parent=1 // pred_check_branch
      %113 = sbr.rel (0) target = $region37
    $region36: #{tpu_custom_call.1} parent=1 // pred_region
      %s115 = ssub.s32 16, 16
      %116 = vsyncadd [#allocation15], %s115
      %s118 = sshll.u32 [#allocation16], 4
      %s119 = int_to_ptr.vmem [resolvable:$true] %s118
      %121 = dma.hbm_to_vmem [thread:$0]  %s8, 16, %s119, [#allocation15]
    $region37: #{tpu_custom_call.1} parent=1 // pred_fallthru
      _
    // Predicated region
    $region38: #{tpu_custom_call.1} parent=1 // pred_check
      _
    $region39: #{tpu_custom_call.1} parent=1 // pred_check_branch
      %123 = sbr.rel (0) target = $region41
    $region40: #{tpu_custom_call.1} parent=1 // pred_region
      %s125 = ssub.s32 1024, 1024
      %126 = vsyncadd [#allocation18], %s125
      %s127 = sshll.u32 [#allocation17], 4
      %s128 = int_to_ptr.vmem [resolvable:$true] %s127
      %133 = dma.hbm_to_vmem [thread:$0]  %s9, 1024, %s128, [#allocation18], 64, 64, 4
    $region41: #{tpu_custom_call.1} parent=1 // pred_fallthru
      _
    // Predicated region
    $region42: #{tpu_custom_call.1} parent=1 // pred_check
      _
    $region43: #{tpu_custom_call.1} parent=1 // pred_check_branch
      %135 = sbr.rel (0) target = $region45
    $region44: #{tpu_custom_call.1} parent=1 // pred_region
      %s137 = ssub.s32 16, 16
      %138 = vsyncadd [#allocation18], %s137
      %s140 = sshll.u32 [#allocation19], 4
      %s141 = int_to_ptr.vmem [resolvable:$true] %s140
      %143 = dma.hbm_to_vmem [thread:$0]  %s10, 16, %s141, [#allocation18]
    $region45: #{tpu_custom_call.1} parent=1 // pred_fallthru
      _
    // Predicated region
    $region46: #{tpu_custom_call.1} parent=1 // pred_check
      _
    $region47: #{tpu_custom_call.1} parent=1 // pred_check_branch
      %145 = sbr.rel (0) target = $region49
    $region48: #{tpu_custom_call.1} parent=1 // pred_region
      %s147 = ssub.s32 1024, 1024
      %148 = vsyncadd [#allocation21], %s147
      %s149 = sshll.u32 [#allocation20], 4
      %s150 = int_to_ptr.vmem [resolvable:$true] %s149
      %155 = dma.hbm_to_vmem [thread:$0]  %s11, 1024, %s150, [#allocation21], 64, 64, 4
    $region49: #{tpu_custom_call.1} parent=1 // pred_fallthru
      _
    // Predicated region
    $region50: #{tpu_custom_call.1} parent=1 // pred_check
      _
    $region51: #{tpu_custom_call.1} parent=1 // pred_check_branch
      %157 = sbr.rel (0) target = $region53
    $region52: #{tpu_custom_call.1} parent=1 // pred_region
      %s159 = ssub.s32 16, 16
      %160 = vsyncadd [#allocation21], %s159
      %s162 = sshll.u32 [#allocation22], 4
      %s163 = int_to_ptr.vmem [resolvable:$true] %s162
      %165 = dma.hbm_to_vmem [thread:$0]  %s12, 16, %s163, [#allocation21]
    $region53: #{tpu_custom_call.1} parent=1 // pred_fallthru
      _
    // Predicated region
    $region54: #{tpu_custom_call.1} parent=1 // pred_check
      _
    $region55: #{tpu_custom_call.1} parent=1 // pred_check_branch
      %167 = sbr.rel (0) target = $region57
    $region56: #{tpu_custom_call.1} parent=1 // pred_region
      %168 = dma.done [#allocation3], 4096
    $region57: #{tpu_custom_call.1} parent=1 // pred_fallthru
      _
    // Predicated region
    $region58: #{tpu_custom_call.1} parent=1 // pred_check
      _
    $region59: #{tpu_custom_call.1} parent=1 // pred_check_branch
      %170 = sbr.rel (0) target = $region61
    $region60: #{tpu_custom_call.1} parent=1 // pred_region
      %171 = dma.done [#allocation6], 16
    $region61: #{tpu_custom_call.1} parent=1 // pred_fallthru
      _
    // Predicated region
    $region62: #{tpu_custom_call.1} parent=1 // pred_check
      _
    $region63: #{tpu_custom_call.1} parent=1 // pred_check_branch
      %173 = sbr.rel (0) target = $region65
    $region64: #{tpu_custom_call.1} parent=1 // pred_region
      %174 = dma.done [#allocation6], 16
    $region65: #{tpu_custom_call.1} parent=1 // pred_fallthru
      _
    // Predicated region
    $region66: #{tpu_custom_call.1} parent=1 // pred_check
      _
    $region67: #{tpu_custom_call.1} parent=1 // pred_check_branch
      %176 = sbr.rel (0) target = $region69
    $region68: #{tpu_custom_call.1} parent=1 // pred_region
      %177 = dma.done [#allocation9], 32
    $region69: #{tpu_custom_call.1} parent=1 // pred_fallthru
      _
    // Predicated region
    $region70: #{tpu_custom_call.1} parent=1 // pred_check
      _
    $region71: #{tpu_custom_call.1} parent=1 // pred_check_branch
      %179 = sbr.rel (0) target = $region73
    $region72: #{tpu_custom_call.1} parent=1 // pred_region
      %180 = dma.done [#allocation9], 16
    $region73: #{tpu_custom_call.1} parent=1 // pred_fallthru
      _
    // Predicated region
    $region74: #{tpu_custom_call.1} parent=1 // pred_check
      _
    $region75: #{tpu_custom_call.1} parent=1 // pred_check_branch
      %182 = sbr.rel (0) target = $region77
    $region76: #{tpu_custom_call.1} parent=1 // pred_region
      %183 = dma.done [#allocation12], 1024
    $region77: #{tpu_custom_call.1} parent=1 // pred_fallthru
      _
    // Predicated region
    $region78: #{tpu_custom_call.1} parent=1 // pred_check
      _
    $region79: #{tpu_custom_call.1} parent=1 // pred_check_branch
      %185 = sbr.rel (0) target = $region81
    $region80: #{tpu_custom_call.1} parent=1 // pred_region
      %186 = dma.done [#allocation12], 16
    $region81: #{tpu_custom_call.1} parent=1 // pred_fallthru
      _
    // Predicated region
    $region82: #{tpu_custom_call.1} parent=1 // pred_check
      _
    $region83: #{tpu_custom_call.1} parent=1 // pred_check_branch
      %188 = sbr.rel (0) target = $region85
    $region84: #{tpu_custom_call.1} parent=1 // pred_region
      %189 = dma.done [#allocation15], 1024
    $region85: #{tpu_custom_call.1} parent=1 // pred_fallthru
      _
    // Predicated region
    $region86: #{tpu_custom_call.1} parent=1 // pred_check
      _
    $region87: #{tpu_custom_call.1} parent=1 // pred_check_branch
      %191 = sbr.rel (0) target = $region89
    $region88: #{tpu_custom_call.1} parent=1 // pred_region
      %192 = dma.done [#allocation15], 16
    $region89: #{tpu_custom_call.1} parent=1 // pred_fallthru
      _
    // Predicated region
    $region90: #{tpu_custom_call.1} parent=1 // pred_check
      _
    $region91: #{tpu_custom_call.1} parent=1 // pred_check_branch
      %194 = sbr.rel (0) target = $region93
    $region92: #{tpu_custom_call.1} parent=1 // pred_region
      %195 = dma.done [#allocation18], 1024
    $region93: #{tpu_custom_call.1} parent=1 // pred_fallthru
      _
    // Predicated region
    $region94: #{tpu_custom_call.1} parent=1 // pred_check
      _
    $region95: #{tpu_custom_call.1} parent=1 // pred_check_branch
      %197 = sbr.rel (0) target = $region97
    $region96: #{tpu_custom_call.1} parent=1 // pred_region
      %198 = dma.done [#allocation18], 16
    $region97: #{tpu_custom_call.1} parent=1 // pred_fallthru
      _
    // Predicated region
    $region98: #{tpu_custom_call.1} parent=1 // pred_check
      _
    $region99: #{tpu_custom_call.1} parent=1 // pred_check_branch
      %200 = sbr.rel (0) target = $region101
    $region100: #{tpu_custom_call.1} parent=1 // pred_region
      %201 = dma.done [#allocation21], 1024
    $region101: #{tpu_custom_call.1} parent=1 // pred_fallthru
      _
    // Predicated region
    $region102: #{tpu_custom_call.1} parent=1 // pred_check
      _
    $region103: #{tpu_custom_call.1} parent=1 // pred_check_branch
      %203 = sbr.rel (0) target = $region105
    $region104: #{tpu_custom_call.1} parent=1 // pred_region
      %204 = dma.done [#allocation21], 16
    $region105: #{tpu_custom_call.1} parent=1 // pred_fallthru
      _
    %v206 = vld [vmem:[#allocation5] sm:$0x1]
    %v207 = vld [vmem:[#allocation7] sm:$0x1]
    %v208 = vlaneseq
    %v209 = vshrl.u32 %v208, 7
    %v210 = vadd.s32 %v209, 8
    %v211 = vadd.s32 %v209, 16
    %v212 = vadd.s32 %v209, 24
    %v213 = vadd.s32 %v209, 32
    %v214 = vadd.s32 %v209, 40
    %v215 = vadd.s32 %v209, 48
    %v216 = vadd.s32 %v209, 56
    %v217 = vadd.s32 %v209, 64
    %v218 = vadd.s32 %v209, 72
    %v219 = vadd.s32 %v209, 80
    %v220 = vadd.s32 %v209, 88
    %v221 = vadd.s32 %v209, 96
    %v222 = vadd.s32 %v209, 104
    %v223 = vadd.s32 %v209, 112
    %v224 = vadd.s32 %v209, 120
    %v225 = vadd.s32 %v209, 128
    %v226 = vadd.s32 %v209, 136
    %v227 = vadd.s32 %v209, 144
    %v228 = vadd.s32 %v209, 152
    %v229 = vadd.s32 %v209, 160
    %v230 = vadd.s32 %v209, 168
    %v231 = vadd.s32 %v209, 176
    %v232 = vadd.s32 %v209, 184
    %v233 = vadd.s32 %v209, 192
    %v234 = vadd.s32 %v209, 200
    %v235 = vadd.s32 %v209, 208
    %v236 = vadd.s32 %v209, 216
    %v237 = vadd.s32 %v209, 224
    %v238 = vadd.s32 %v209, 232
    %v239 = vadd.s32 %v209, 240
    %v240 = vadd.s32 %v209, 248
    %vm241 = vcmp.lt.s32.totalorder %v209, 250
    %vm242 = vcmp.lt.s32.totalorder %v210, 250
    %vm243 = vcmp.lt.s32.totalorder %v211, 250
    %vm244 = vcmp.lt.s32.totalorder %v212, 250
    %vm245 = vcmp.lt.s32.totalorder %v213, 250
    %vm246 = vcmp.lt.s32.totalorder %v214, 250
    %vm247 = vcmp.lt.s32.totalorder %v215, 250
    %vm248 = vcmp.lt.s32.totalorder %v216, 250
    %vm249 = vcmp.lt.s32.totalorder %v217, 250
    %vm250 = vcmp.lt.s32.totalorder %v218, 250
    %vm251 = vcmp.lt.s32.totalorder %v219, 250
    %vm252 = vcmp.lt.s32.totalorder %v220, 250
    %vm253 = vcmp.lt.s32.totalorder %v221, 250
    %vm254 = vcmp.lt.s32.totalorder %v222, 250
    %vm255 = vcmp.lt.s32.totalorder %v223, 250
    %vm256 = vcmp.lt.s32.totalorder %v224, 250
    %vm257 = vcmp.lt.s32.totalorder %v225, 250
    %vm258 = vcmp.lt.s32.totalorder %v226, 250
    %vm259 = vcmp.lt.s32.totalorder %v227, 250
    %vm260 = vcmp.lt.s32.totalorder %v228, 250
    %vm261 = vcmp.lt.s32.totalorder %v229, 250
    %vm262 = vcmp.lt.s32.totalorder %v230, 250
    %vm263 = vcmp.lt.s32.totalorder %v231, 250
    %vm264 = vcmp.lt.s32.totalorder %v232, 250
    %vm265 = vcmp.lt.s32.totalorder %v233, 250
    %vm266 = vcmp.lt.s32.totalorder %v234, 250
    %vm267 = vcmp.lt.s32.totalorder %v235, 250
    %vm268 = vcmp.lt.s32.totalorder %v236, 250
    %vm269 = vcmp.lt.s32.totalorder %v237, 250
    %vm270 = vcmp.lt.s32.totalorder %v238, 250
    %vm271 = vcmp.lt.s32.totalorder %v239, 250
    %vm272 = vcmp.lt.s32.totalorder %v240, 250
    %v273 = vsel %vm241, 1, 0
    %v274 = vsel %vm242, 1, 0
    %v275 = vsel %vm243, 1, 0
    %v276 = vsel %vm244, 1, 0
    %v277 = vsel %vm245, 1, 0
    %v278 = vsel %vm246, 1, 0
    %v279 = vsel %vm247, 1, 0
    %v280 = vsel %vm248, 1, 0
    %v281 = vsel %vm249, 1, 0
    %v282 = vsel %vm250, 1, 0
    %v283 = vsel %vm251, 1, 0
    %v284 = vsel %vm252, 1, 0
    %v285 = vsel %vm253, 1, 0
    %v286 = vsel %vm254, 1, 0
    %v287 = vsel %vm255, 1, 0
    %v288 = vsel %vm256, 1, 0
    %v289 = vsel %vm257, 1, 0
    %v290 = vsel %vm258, 1, 0
    %v291 = vsel %vm259, 1, 0
    %v292 = vsel %vm260, 1, 0
    %v293 = vsel %vm261, 1, 0
    %v294 = vsel %vm262, 1, 0
    %v295 = vsel %vm263, 1, 0
    %v296 = vsel %vm264, 1, 0
    %v297 = vsel %vm265, 1, 0
    %v298 = vsel %vm266, 1, 0
    %v299 = vsel %vm267, 1, 0
    %v300 = vsel %vm268, 1, 0
    %v301 = vsel %vm269, 1, 0
    %v302 = vsel %vm270, 1, 0
    %v303 = vsel %vm271, 1, 0
    %v304 = vsel %vm272, 1, 0
    %v305 = vcvt.s32.f32 %v273
    %v306 = vcvt.s32.f32 %v274
    %v307 = vcvt.s32.f32 %v275
    %v308 = vcvt.s32.f32 %v276
    %v309 = vcvt.s32.f32 %v277
    %v310 = vcvt.s32.f32 %v278
    %v311 = vcvt.s32.f32 %v279
    %v312 = vcvt.s32.f32 %v280
    %v313 = vcvt.s32.f32 %v281
    %v314 = vcvt.s32.f32 %v282
    %v315 = vcvt.s32.f32 %v283
    %v316 = vcvt.s32.f32 %v284
    %v317 = vcvt.s32.f32 %v285
    %v318 = vcvt.s32.f32 %v286
    %v319 = vcvt.s32.f32 %v287
    %v320 = vcvt.s32.f32 %v288
    %v321 = vcvt.s32.f32 %v289
    %v322 = vcvt.s32.f32 %v290
    %v323 = vcvt.s32.f32 %v291
    %v324 = vcvt.s32.f32 %v292
    %v325 = vcvt.s32.f32 %v293
    %v326 = vcvt.s32.f32 %v294
    %v327 = vcvt.s32.f32 %v295
    %v328 = vcvt.s32.f32 %v296
    %v329 = vcvt.s32.f32 %v297
    %v330 = vcvt.s32.f32 %v298
    %v331 = vcvt.s32.f32 %v299
    %v332 = vcvt.s32.f32 %v300
    %v333 = vcvt.s32.f32 %v301
    %v334 = vcvt.s32.f32 %v302
    %v335 = vcvt.s32.f32 %v303
    %v336 = vcvt.s32.f32 %v304
    %v337 = vld [vmem:[#allocation2] sm:$0xff]
    %v338 = vld [vmem:[#allocation2 + $0x8] sm:$0xff]
    %v339 = vld [vmem:[#allocation2 + $0x10] sm:$0xff]
    %v340 = vld [vmem:[#allocation2 + $0x18] sm:$0xff]
    %v341 = vld [vmem:[#allocation2 + $0x20] sm:$0xff]
    %v342 = vld [vmem:[#allocation2 + $0x28] sm:$0xff]
    %v343 = vld [vmem:[#allocation2 + $0x30] sm:$0xff]
    %v344 = vld [vmem:[#allocation2 + $0x38] sm:$0xff]
    %v345 = vld [vmem:[#allocation2 + $0x40] sm:$0xff]
    %v346 = vld [vmem:[#allocation2 + $0x48] sm:$0xff]
    %v347 = vld [vmem:[#allocation2 + $0x50] sm:$0xff]
    %v348 = vld [vmem:[#allocation2 + $0x58] sm:$0xff]
    %v349 = vld [vmem:[#allocation2 + $0x60] sm:$0xff]
    %v350 = vld [vmem:[#allocation2 + $0x68] sm:$0xff]
    %v351 = vld [vmem:[#allocation2 + $0x70] sm:$0xff]
    %v352 = vld [vmem:[#allocation2 + $0x78] sm:$0xff]
    %v353 = vld [vmem:[#allocation2 + $0x80] sm:$0xff]
    %v354 = vld [vmem:[#allocation2 + $0x88] sm:$0xff]
    %v355 = vld [vmem:[#allocation2 + $0x90] sm:$0xff]
    %v356 = vld [vmem:[#allocation2 + $0x98] sm:$0xff]
    %v357 = vld [vmem:[#allocation2 + $0xa0] sm:$0xff]
    %v358 = vld [vmem:[#allocation2 + $0xa8] sm:$0xff]
    %v359 = vld [vmem:[#allocation2 + $0xb0] sm:$0xff]
    %v360 = vld [vmem:[#allocation2 + $0xb8] sm:$0xff]
    %v361 = vld [vmem:[#allocation2 + $0xc0] sm:$0xff]
    %v362 = vld [vmem:[#allocation2 + $0xc8] sm:$0xff]
    %v363 = vld [vmem:[#allocation2 + $0xd0] sm:$0xff]
    %v364 = vld [vmem:[#allocation2 + $0xd8] sm:$0xff]
    %v365 = vld [vmem:[#allocation2 + $0xe0] sm:$0xff]
    %v366 = vld [vmem:[#allocation2 + $0xe8] sm:$0xff]
    %v367 = vld [vmem:[#allocation2 + $0xf0] sm:$0xff]
    %v368 = vld [vmem:[#allocation2 + $0xf8] sm:$0xff]
    %v369 = vpack.c.bf16 %v338, %v337
    %v370 = vpack.c.bf16 %v340, %v339
    %v371 = vpack.c.bf16 %v342, %v341
    %v372 = vpack.c.bf16 %v344, %v343
    %v373 = vpack.c.bf16 %v346, %v345
    %v374 = vpack.c.bf16 %v348, %v347
    %v375 = vpack.c.bf16 %v350, %v349
    %v376 = vpack.c.bf16 %v352, %v351
    %v377 = vpack.c.bf16 %v354, %v353
    %v378 = vpack.c.bf16 %v356, %v355
    %v379 = vpack.c.bf16 %v358, %v357
    %v380 = vpack.c.bf16 %v360, %v359
    %v381 = vpack.c.bf16 %v362, %v361
    %v382 = vpack.c.bf16 %v364, %v363
    %v383 = vpack.c.bf16 %v366, %v365
    %v384 = vpack.c.bf16 %v368, %v367
    %v385 = vld [vmem:[#allocation8] sm:$0x3]
    %v386 = vld [vmem:[#allocation10] sm:$0x1]
    %v388 = vlaneseq
    %v389 = vshrl.u32 %v388, 7
    %v390 = vsub.s32 0, %v389
    %v391 = vrot.slane %v386, %v390
    %vm393 = vcmask 31744
    %v395 = vsel %vm393, %v369, 0
    %v398 = vsel %vm393, %v370, 0
    %v401 = vsel %vm393, %v371, 0
    %v404 = vsel %vm393, %v372, 0
    %v407 = vsel %vm393, %v373, 0
    %v410 = vsel %vm393, %v374, 0
    %v413 = vsel %vm393, %v375, 0
    %v416 = vsel %vm393, %v376, 0
    %v419 = vsel %vm393, %v377, 0
    %v422 = vsel %vm393, %v378, 0
    %v425 = vsel %vm393, %v379, 0
    %v428 = vsel %vm393, %v380, 0
    %v431 = vsel %vm393, %v381, 0
    %v434 = vsel %vm393, %v382, 0
    %v437 = vsel %vm393, %v383, 0
    %v440 = vsel %vm393, %v384, 0
    %vm442 = vcmask 1041408
    %v444 = vsel %vm442, %v385, 0
    %446 = vmatprep.subr.bf16.mxu0 0
    %447 = vmatpush1.bf16.msra.mxu0 %v444
    %448 = vmatprep.subr.bf16.mxu0 0
    %449 = vmatpush1.bf16.msra.mxu0 0
    %450 = vmatprep.subr.bf16.mxu0 0
    %451 = vmatpush1.bf16.msra.mxu0 0
    %452 = vmatprep.subr.bf16.mxu0 0
    %453 = vmatpush1.bf16.msra.mxu0 0
    %454 = vmatprep.subr.bf16.mxu0 0
    %455 = vmatpush1.bf16.msra.mxu0 0
    %456 = vmatprep.subr.bf16.mxu0 0
    %457 = vmatpush1.bf16.msra.mxu0 0
    %458 = vmatprep.subr.bf16.mxu0 0
    %459 = vmatpush1.bf16.msra.mxu0 0
    %460 = vmatprep.subr.bf16.mxu0 0
    %461 = vmatpush1.bf16.msra.mxu0 0
    %462 = vmatprep.subr.bf16.mxu0 0
    %463 = vmatpush1.bf16.msra.mxu0 0
    %464 = vmatprep.subr.bf16.mxu0 0
    %465 = vmatpush1.bf16.msra.mxu0 0
    %466 = vmatprep.subr.bf16.mxu0 0
    %467 = vmatpush1.bf16.msra.mxu0 0
    %468 = vmatprep.subr.bf16.mxu0 0
    %469 = vmatpush1.bf16.msra.mxu0 0
    %470 = vmatprep.subr.bf16.mxu0 0
    %471 = vmatpush1.bf16.msra.mxu0 0
    %472 = vmatprep.subr.bf16.mxu0 0
    %473 = vmatpush1.bf16.msra.mxu0 0
    %474 = vmatprep.subr.bf16.mxu0 0
    %475 = vmatpush1.bf16.msra.mxu0 0
    %476 = vmatprep.subr.bf16.mxu0 0
    %477 = vmatpush1.bf16.msra.mxu0 0
    %478 = vmatprep.mubr.bf16.mxu0 0
    %479 = vmatmul.mubr.bf16.gmra.mrb[0].mxu0 %v395
    %v480 = vpop.f32.mrb[0].mxu0
    %v481 = vadd.f32 %v391, %v480
    %v482 = vpop.f32.mrb[0].mxu0
    %v483 = vpop.f32.mrb[0].mxu0
    %v484 = vadd.f32 %v391, %v483
    %v485 = vpop.f32.mrb[0].mxu0
    %486 = vmatprep.mubr.bf16.mxu0 0
    %487 = vmatmul.mubr.bf16.gmra.mrb[0].mxu0 %v398
    %v488 = vpop.f32.mrb[0].mxu0
    %v489 = vadd.f32 %v391, %v488
    %v490 = vpop.f32.mrb[0].mxu0
    %v491 = vpop.f32.mrb[0].mxu0
    %v492 = vadd.f32 %v391, %v491
    %v493 = vpop.f32.mrb[0].mxu0
    %494 = vmatprep.mubr.bf16.mxu0 0
    %495 = vmatmul.mubr.bf16.gmra.mrb[0].mxu0 %v401
    %v496 = vpop.f32.mrb[0].mxu0
    %v497 = vadd.f32 %v391, %v496
    %v498 = vpop.f32.mrb[0].mxu0
    %v499 = vpop.f32.mrb[0].mxu0
    %v500 = vadd.f32 %v391, %v499
    %v501 = vpop.f32.mrb[0].mxu0
    %502 = vmatprep.mubr.bf16.mxu0 0
    %503 = vmatmul.mubr.bf16.gmra.mrb[0].mxu0 %v404
    %v504 = vpop.f32.mrb[0].mxu0
    %v505 = vadd.f32 %v391, %v504
    %v506 = vpop.f32.mrb[0].mxu0
    %v507 = vpop.f32.mrb[0].mxu0
    %v508 = vadd.f32 %v391, %v507
    %v509 = vpop.f32.mrb[0].mxu0
    %510 = vmatprep.mubr.bf16.mxu0 0
    %511 = vmatmul.mubr.bf16.gmra.mrb[0].mxu0 %v407
    %v512 = vpop.f32.mrb[0].mxu0
    %v513 = vadd.f32 %v391, %v512
    %v514 = vpop.f32.mrb[0].mxu0
    %v515 = vpop.f32.mrb[0].mxu0
    %v516 = vadd.f32 %v391, %v515
    %v517 = vpop.f32.mrb[0].mxu0
    %518 = vmatprep.mubr.bf16.mxu0 0
    %519 = vmatmul.mubr.bf16.gmra.mrb[0].mxu0 %v410
    %v520 = vpop.f32.mrb[0].mxu0
    %v521 = vadd.f32 %v391, %v520
    %v522 = vpop.f32.mrb[0].mxu0
    %v523 = vpop.f32.mrb[0].mxu0
    %v524 = vadd.f32 %v391, %v523
    %v525 = vpop.f32.mrb[0].mxu0
    %526 = vmatprep.mubr.bf16.mxu0 0
    %527 = vmatmul.mubr.bf16.gmra.mrb[0].mxu0 %v413
    %v528 = vpop.f32.mrb[0].mxu0
    %v529 = vadd.f32 %v391, %v528
    %v530 = vpop.f32.mrb[0].mxu0
    %v531 = vpop.f32.mrb[0].mxu0
    %v532 = vadd.f32 %v391, %v531
    %v533 = vpop.f32.mrb[0].mxu0
    %534 = vmatprep.mubr.bf16.mxu0 0
    %535 = vmatmul.mubr.bf16.gmra.mrb[0].mxu0 %v416
    %v536 = vpop.f32.mrb[0].mxu0
    %v537 = vadd.f32 %v391, %v536
    %v538 = vpop.f32.mrb[0].mxu0
    %v539 = vpop.f32.mrb[0].mxu0
    %v540 = vadd.f32 %v391, %v539
    %v541 = vpop.f32.mrb[0].mxu0
    %542 = vmatprep.mubr.bf16.mxu0 0
    %543 = vmatmul.mubr.bf16.gmra.mrb[0].mxu0 %v419
    %v544 = vpop.f32.mrb[0].mxu0
    %v545 = vadd.f32 %v391, %v544
    %v546 = vpop.f32.mrb[0].mxu0
    %v547 = vpop.f32.mrb[0].mxu0
    %v548 = vadd.f32 %v391, %v547
    %v549 = vpop.f32.mrb[0].mxu0
    %550 = vmatprep.mubr.bf16.mxu0 0
    %551 = vmatmul.mubr.bf16.gmra.mrb[0].mxu0 %v422
    %v552 = vpop.f32.mrb[0].mxu0
    %v553 = vadd.f32 %v391, %v552
    %v554 = vpop.f32.mrb[0].mxu0
    %v555 = vpop.f32.mrb[0].mxu0
    %v556 = vadd.f32 %v391, %v555
    %v557 = vpop.f32.mrb[0].mxu0
    %558 = vmatprep.mubr.bf16.mxu0 0
    %559 = vmatmul.mubr.bf16.gmra.mrb[0].mxu0 %v425
    %v560 = vpop.f32.mrb[0].mxu0
    %v561 = vadd.f32 %v391, %v560
    %v562 = vpop.f32.mrb[0].mxu0
    %v563 = vpop.f32.mrb[0].mxu0
    %v564 = vadd.f32 %v391, %v563
    %v565 = vpop.f32.mrb[0].mxu0
    %566 = vmatprep.mubr.bf16.mxu0 0
    %567 = vmatmul.mubr.bf16.gmra.mrb[0].mxu0 %v428
    %v568 = vpop.f32.mrb[0].mxu0
    %v569 = vadd.f32 %v391, %v568
    %v570 = vpop.f32.mrb[0].mxu0
    %v571 = vpop.f32.mrb[0].mxu0
    %v572 = vadd.f32 %v391, %v571
    %v573 = vpop.f32.mrb[0].mxu0
    %574 = vmatprep.mubr.bf16.mxu0 0
    %575 = vmatmul.mubr.bf16.gmra.mrb[0].mxu0 %v431
    %v576 = vpop.f32.mrb[0].mxu0
    %v577 = vadd.f32 %v391, %v576
    %v578 = vpop.f32.mrb[0].mxu0
    %v579 = vpop.f32.mrb[0].mxu0
    %v580 = vadd.f32 %v391, %v579
    %v581 = vpop.f32.mrb[0].mxu0
    %582 = vmatprep.mubr.bf16.mxu0 0
    %583 = vmatmul.mubr.bf16.gmra.mrb[0].mxu0 %v434
    %v584 = vpop.f32.mrb[0].mxu0
    %v585 = vadd.f32 %v391, %v584
    %v586 = vpop.f32.mrb[0].mxu0
    %v587 = vpop.f32.mrb[0].mxu0
    %v588 = vadd.f32 %v391, %v587
    %v589 = vpop.f32.mrb[0].mxu0
    %590 = vmatprep.mubr.bf16.mxu0 0
    %591 = vmatmul.mubr.bf16.gmra.mrb[0].mxu0 %v437
    %v592 = vpop.f32.mrb[0].mxu0
    %v593 = vadd.f32 %v391, %v592
    %v594 = vpop.f32.mrb[0].mxu0
    %v595 = vpop.f32.mrb[0].mxu0
    %v596 = vadd.f32 %v391, %v595
    %v597 = vpop.f32.mrb[0].mxu0
    %598 = vmatprep.mubr.bf16.mxu0 0
    %599 = vmatmul.mubr.bf16.gmra.mrb[0].mxu0 %v440
    %v600 = vpop.f32.mrb[0].mxu0
    %v601 = vadd.f32 %v391, %v600
    %v602 = vpop.f32.mrb[0].mxu0
    %v603 = vpop.f32.mrb[0].mxu0
    %v604 = vadd.f32 %v391, %v603
    %v605 = vpop.f32.mrb[0].mxu0
    %606 = vdwg.mxu0
    %v607 = vtanh.pop %v481
    %v608 = vtanh.pop %v484
    %v609 = vtanh.pop %v489
    %v610 = vtanh.pop %v492
    %v611 = vtanh.pop %v497
    %v612 = vtanh.pop %v500
    %v613 = vtanh.pop %v505
    %v614 = vtanh.pop %v508
    %v615 = vtanh.pop %v513
    %v616 = vtanh.pop %v516
    %v617 = vtanh.pop %v521
    %v618 = vtanh.pop %v524
    %v619 = vtanh.pop %v529
    %v620 = vtanh.pop %v532
    %v621 = vtanh.pop %v537
    %v622 = vtanh.pop %v540
    %v623 = vtanh.pop %v545
    %v624 = vtanh.pop %v548
    %v625 = vtanh.pop %v553
    %v626 = vtanh.pop %v556
    %v627 = vtanh.pop %v561
    %v628 = vtanh.pop %v564
    %v629 = vtanh.pop %v569
    %v630 = vtanh.pop %v572
    %v631 = vtanh.pop %v577
    %v632 = vtanh.pop %v580
    %v633 = vtanh.pop %v585
    %v634 = vtanh.pop %v588
    %v635 = vtanh.pop %v593
    %v636 = vtanh.pop %v596
    %v637 = vtanh.pop %v601
    %v638 = vtanh.pop %v604
    %v639 = vmul.f32 %v607, %v305
    %v640 = vmul.f32 %v608, %v306
    %v641 = vmul.f32 %v609, %v307
    %v642 = vmul.f32 %v610, %v308
    %v643 = vmul.f32 %v611, %v309
    %v644 = vmul.f32 %v612, %v310
    %v645 = vmul.f32 %v613, %v311
    %v646 = vmul.f32 %v614, %v312
    %v647 = vmul.f32 %v615, %v313
    %v648 = vmul.f32 %v616, %v314
    %v649 = vmul.f32 %v617, %v315
    %v650 = vmul.f32 %v618, %v316
    %v651 = vmul.f32 %v619, %v317
    %v652 = vmul.f32 %v620, %v318
    %v653 = vmul.f32 %v621, %v319
    %v654 = vmul.f32 %v622, %v320
    %v655 = vmul.f32 %v623, %v321
    %v656 = vmul.f32 %v624, %v322
    %v657 = vmul.f32 %v625, %v323
    %v658 = vmul.f32 %v626, %v324
    %v659 = vmul.f32 %v627, %v325
    %v660 = vmul.f32 %v628, %v326
    %v661 = vmul.f32 %v629, %v327
    %v662 = vmul.f32 %v630, %v328
    %v663 = vmul.f32 %v631, %v329
    %v664 = vmul.f32 %v632, %v330
    %v665 = vmul.f32 %v633, %v331
    %v666 = vmul.f32 %v634, %v332
    %v667 = vmul.f32 %v635, %v333
    %v668 = vmul.f32 %v636, %v334
    %v669 = vmul.f32 %v637, %v335
    %v670 = vmul.f32 %v638, %v336
    %v671 = vadd.f32 %v639, %v640
    %v672 = vadd.f32 %v671, %v641
    %v673 = vadd.f32 %v672, %v642
    %v674 = vadd.f32 %v673, %v643
    %v675 = vadd.f32 %v674, %v644
    %v676 = vadd.f32 %v675, %v645
    %v677 = vadd.f32 %v676, %v646
    %v678 = vadd.f32 %v677, %v647
    %v679 = vadd.f32 %v678, %v648
    %v680 = vadd.f32 %v679, %v649
    %v681 = vadd.f32 %v680, %v650
    %v682 = vadd.f32 %v681, %v651
    %v683 = vadd.f32 %v682, %v652
    %v684 = vadd.f32 %v683, %v653
    %v685 = vadd.f32 %v684, %v654
    %v686 = vadd.f32 %v685, %v655
    %v687 = vadd.f32 %v686, %v656
    %v688 = vadd.f32 %v687, %v657
    %v689 = vadd.f32 %v688, %v658
    %v690 = vadd.f32 %v689, %v659
    %v691 = vadd.f32 %v690, %v660
    %v692 = vadd.f32 %v691, %v661
    %v693 = vadd.f32 %v692, %v662
    %v694 = vadd.f32 %v693, %v663
    %v695 = vadd.f32 %v694, %v664
    %v696 = vadd.f32 %v695, %v665
    %v697 = vadd.f32 %v696, %v666
    %v698 = vadd.f32 %v697, %v667
    %v699 = vadd.f32 %v698, %v668
    %v700 = vadd.f32 %v699, %v669
    %v701 = vadd.f32 %v700, %v670
    %v702 = vrot.slane %v701, 4
    %v703 = vadd.f32 %v701, %v702
    %v704 = vrot.slane %v703, 2
    %v705 = vadd.f32 %v703, %v704
    %v706 = vrot.slane %v705, 1
    %v707 = vadd.f32 %v705, %v706
    %v708 = vmul.f32 %v707, 0.004
    %v709 = vsub.f32 %v607, %v708
    %v710 = vsub.f32 %v608, %v708
    %v711 = vsub.f32 %v609, %v708
    %v712 = vsub.f32 %v610, %v708
    %v713 = vsub.f32 %v611, %v708
    %v714 = vsub.f32 %v612, %v708
    %v715 = vsub.f32 %v613, %v708
    %v716 = vsub.f32 %v614, %v708
    %v717 = vsub.f32 %v615, %v708
    %v718 = vsub.f32 %v616, %v708
    %v719 = vsub.f32 %v617, %v708
    %v720 = vsub.f32 %v618, %v708
    %v721 = vsub.f32 %v619, %v708
    %v722 = vsub.f32 %v620, %v708
    %v723 = vsub.f32 %v621, %v708
    %v724 = vsub.f32 %v622, %v708
    %v725 = vsub.f32 %v623, %v708
    %v726 = vsub.f32 %v624, %v708
    %v727 = vsub.f32 %v625, %v708
    %v728 = vsub.f32 %v626, %v708
    %v729 = vsub.f32 %v627, %v708
    %v730 = vsub.f32 %v628, %v708
    %v731 = vsub.f32 %v629, %v708
    %v732 = vsub.f32 %v630, %v708
    %v733 = vsub.f32 %v631, %v708
    %v734 = vsub.f32 %v632, %v708
    %v735 = vsub.f32 %v633, %v708
    %v736 = vsub.f32 %v634, %v708
    %v737 = vsub.f32 %v635, %v708
    %v738 = vsub.f32 %v636, %v708
    %v739 = vsub.f32 %v637, %v708
    %v740 = vsub.f32 %v638, %v708
    %v741 = vmul.f32 %v709, %v305
    %v742 = vmul.f32 %v710, %v306
    %v743 = vmul.f32 %v711, %v307
    %v744 = vmul.f32 %v712, %v308
    %v745 = vmul.f32 %v713, %v309
    %v746 = vmul.f32 %v714, %v310
    %v747 = vmul.f32 %v715, %v311
    %v748 = vmul.f32 %v716, %v312
    %v749 = vmul.f32 %v717, %v313
    %v750 = vmul.f32 %v718, %v314
    %v751 = vmul.f32 %v719, %v315
    %v752 = vmul.f32 %v720, %v316
    %v753 = vmul.f32 %v721, %v317
    %v754 = vmul.f32 %v722, %v318
    %v755 = vmul.f32 %v723, %v319
    %v756 = vmul.f32 %v724, %v320
    %v757 = vmul.f32 %v725, %v321
    %v758 = vmul.f32 %v726, %v322
    %v759 = vmul.f32 %v727, %v323
    %v760 = vmul.f32 %v728, %v324
    %v761 = vmul.f32 %v729, %v325
    %v762 = vmul.f32 %v730, %v326
    %v763 = vmul.f32 %v731, %v327
    %v764 = vmul.f32 %v732, %v328
    %v765 = vmul.f32 %v733, %v329
    %v766 = vmul.f32 %v734, %v330
    %v767 = vmul.f32 %v735, %v331
    %v768 = vmul.f32 %v736, %v332
    %v769 = vmul.f32 %v737, %v333
    %v770 = vmul.f32 %v738, %v334
    %v771 = vmul.f32 %v739, %v335
    %v772 = vmul.f32 %v740, %v336
    %v773 = vmul.f32 %v741, %v741
    %v774 = vmul.f32 %v742, %v742
    %v775 = vmul.f32 %v743, %v743
    %v776 = vmul.f32 %v744, %v744
    %v777 = vmul.f32 %v745, %v745
    %v778 = vmul.f32 %v746, %v746
    %v779 = vmul.f32 %v747, %v747
    %v780 = vmul.f32 %v748, %v748
    %v781 = vmul.f32 %v749, %v749
    %v782 = vmul.f32 %v750, %v750
    %v783 = vmul.f32 %v751, %v751
    %v784 = vmul.f32 %v752, %v752
    %v785 = vmul.f32 %v753, %v753
    %v786 = vmul.f32 %v754, %v754
    %v787 = vmul.f32 %v755, %v755
    %v788 = vmul.f32 %v756, %v756
    %v789 = vmul.f32 %v757, %v757
    %v790 = vmul.f32 %v758, %v758
    %v791 = vmul.f32 %v759, %v759
    %v792 = vmul.f32 %v760, %v760
    %v793 = vmul.f32 %v761, %v761
    %v794 = vmul.f32 %v762, %v762
    %v795 = vmul.f32 %v763, %v763
    %v796 = vmul.f32 %v764, %v764
    %v797 = vmul.f32 %v765, %v765
    %v798 = vmul.f32 %v766, %v766
    %v799 = vmul.f32 %v767, %v767
    %v800 = vmul.f32 %v768, %v768
    %v801 = vmul.f32 %v769, %v769
    %v802 = vmul.f32 %v770, %v770
    %v803 = vmul.f32 %v771, %v771
    %v804 = vmul.f32 %v772, %v772
    %v805 = vadd.f32 %v773, %v774
    %v806 = vadd.f32 %v805, %v775
    %v807 = vadd.f32 %v806, %v776
    %v808 = vadd.f32 %v807, %v777
    %v809 = vadd.f32 %v808, %v778
    %v810 = vadd.f32 %v809, %v779
    %v811 = vadd.f32 %v810, %v780
    %v812 = vadd.f32 %v811, %v781
    %v813 = vadd.f32 %v812, %v782
    %v814 = vadd.f32 %v813, %v783
    %v815 = vadd.f32 %v814, %v784
    %v816 = vadd.f32 %v815, %v785
    %v817 = vadd.f32 %v816, %v786
    %v818 = vadd.f32 %v817, %v787
    %v819 = vadd.f32 %v818, %v788
    %v820 = vadd.f32 %v819, %v789
    %v821 = vadd.f32 %v820, %v790
    %v822 = vadd.f32 %v821, %v791
    %v823 = vadd.f32 %v822, %v792
    %v824 = vadd.f32 %v823, %v793
    %v825 = vadd.f32 %v824, %v794
    %v826 = vadd.f32 %v825, %v795
    %v827 = vadd.f32 %v826, %v796
    %v828 = vadd.f32 %v827, %v797
    %v829 = vadd.f32 %v828, %v798
    %v830 = vadd.f32 %v829, %v799
    %v831 = vadd.f32 %v830, %v800
    %v832 = vadd.f32 %v831, %v801
    %v833 = vadd.f32 %v832, %v802
    %v834 = vadd.f32 %v833, %v803
    %v835 = vadd.f32 %v834, %v804
    %v836 = vrot.slane %v835, 4
    %v837 = vadd.f32 %v835, %v836
    %v838 = vrot.slane %v837, 2
    %v839 = vadd.f32 %v837, %v838
    %v840 = vrot.slane %v839, 1
    %v841 = vadd.f32 %v839, %v840
    %v842 = vmul.f32 %v841, 0.004
    %v843 = vadd.f32 %v842, 1e-05
    %v844 = vrsqrt.pop %v843
    %v845 = vmul.f32 %v709, %v844
    %v846 = vmul.f32 %v710, %v844
    %v847 = vmul.f32 %v711, %v844
    %v848 = vmul.f32 %v712, %v844
    %v849 = vmul.f32 %v713, %v844
    %v850 = vmul.f32 %v714, %v844
    %v851 = vmul.f32 %v715, %v844
    %v852 = vmul.f32 %v716, %v844
    %v853 = vmul.f32 %v717, %v844
    %v854 = vmul.f32 %v718, %v844
    %v855 = vmul.f32 %v719, %v844
    %v856 = vmul.f32 %v720, %v844
    %v857 = vmul.f32 %v721, %v844
    %v858 = vmul.f32 %v722, %v844
    %v859 = vmul.f32 %v723, %v844
    %v860 = vmul.f32 %v724, %v844
    %v861 = vmul.f32 %v725, %v844
    %v862 = vmul.f32 %v726, %v844
    %v863 = vmul.f32 %v727, %v844
    %v864 = vmul.f32 %v728, %v844
    %v865 = vmul.f32 %v729, %v844
    %v866 = vmul.f32 %v730, %v844
    %v867 = vmul.f32 %v731, %v844
    %v868 = vmul.f32 %v732, %v844
    %v869 = vmul.f32 %v733, %v844
    %v870 = vmul.f32 %v734, %v844
    %v871 = vmul.f32 %v735, %v844
    %v872 = vmul.f32 %v736, %v844
    %v873 = vmul.f32 %v737, %v844
    %v874 = vmul.f32 %v738, %v844
    %v875 = vmul.f32 %v739, %v844
    %v876 = vmul.f32 %v740, %v844
    %v878 = vlaneseq
    %v879 = vshrl.u32 %v878, 7
    %v880 = vsub.s32 0, %v879
    %v881 = vrot.slane %v206, %v880
    %v883 = vmul.f32 %v845, %v881
    %v884 = vmul.f32 %v846, %v881
    %v885 = vmul.f32 %v847, %v881
    %v886 = vmul.f32 %v848, %v881
    %v887 = vmul.f32 %v849, %v881
    %v888 = vmul.f32 %v850, %v881
    %v889 = vmul.f32 %v851, %v881
    %v890 = vmul.f32 %v852, %v881
    %v891 = vmul.f32 %v853, %v881
    %v892 = vmul.f32 %v854, %v881
    %v893 = vmul.f32 %v855, %v881
    %v894 = vmul.f32 %v856, %v881
    %v895 = vmul.f32 %v857, %v881
    %v896 = vmul.f32 %v858, %v881
    %v897 = vmul.f32 %v859, %v881
    %v898 = vmul.f32 %v860, %v881
    %v899 = vmul.f32 %v861, %v881
    %v900 = vmul.f32 %v862, %v881
    %v901 = vmul.f32 %v863, %v881
    %v902 = vmul.f32 %v864, %v881
    %v903 = vmul.f32 %v865, %v881
    %v904 = vmul.f32 %v866, %v881
    %v905 = vmul.f32 %v867, %v881
    %v906 = vmul.f32 %v868, %v881
    %v907 = vmul.f32 %v869, %v881
    %v908 = vmul.f32 %v870, %v881
    %v909 = vmul.f32 %v871, %v881
    %v910 = vmul.f32 %v872, %v881
    %v911 = vmul.f32 %v873, %v881
    %v912 = vmul.f32 %v874, %v881
    %v913 = vmul.f32 %v875, %v881
    %v914 = vmul.f32 %v876, %v881
    %v916 = vlaneseq
    %v917 = vshrl.u32 %v916, 7
    %v918 = vsub.s32 0, %v917
    %v919 = vrot.slane %v207, %v918
    %v921 = vadd.f32 %v883, %v919
    %v922 = vadd.f32 %v884, %v919
    %v923 = vadd.f32 %v885, %v919
    %v924 = vadd.f32 %v886, %v919
    %v925 = vadd.f32 %v887, %v919
    %v926 = vadd.f32 %v888, %v919
    %v927 = vadd.f32 %v889, %v919
    %v928 = vadd.f32 %v890, %v919
    %v929 = vadd.f32 %v891, %v919
    %v930 = vadd.f32 %v892, %v919
    %v931 = vadd.f32 %v893, %v919
    %v932 = vadd.f32 %v894, %v919
    %v933 = vadd.f32 %v895, %v919
    %v934 = vadd.f32 %v896, %v919
    %v935 = vadd.f32 %v897, %v919
    %v936 = vadd.f32 %v898, %v919
    %v937 = vadd.f32 %v899, %v919
    %v938 = vadd.f32 %v900, %v919
    %v939 = vadd.f32 %v901, %v919
    %v940 = vadd.f32 %v902, %v919
    %v941 = vadd.f32 %v903, %v919
    %v942 = vadd.f32 %v904, %v919
    %v943 = vadd.f32 %v905, %v919
    %v944 = vadd.f32 %v906, %v919
    %v945 = vadd.f32 %v907, %v919
    %v946 = vadd.f32 %v908, %v919
    %v947 = vadd.f32 %v909, %v919
    %v948 = vadd.f32 %v910, %v919
    %v949 = vadd.f32 %v911, %v919
    %v950 = vadd.f32 %v912, %v919
    %v951 = vadd.f32 %v913, %v919
    %v952 = vadd.f32 %v914, %v919
    %v953 = vpack.c.bf16 %v922, %v921
    %v954 = vpack.c.bf16 %v924, %v923
    %v955 = vpack.c.bf16 %v926, %v925
    %v956 = vpack.c.bf16 %v928, %v927
    %v957 = vpack.c.bf16 %v930, %v929
    %v958 = vpack.c.bf16 %v932, %v931
    %v959 = vpack.c.bf16 %v934, %v933
    %v960 = vpack.c.bf16 %v936, %v935
    %v961 = vpack.c.bf16 %v938, %v937
    %v962 = vpack.c.bf16 %v940, %v939
    %v963 = vpack.c.bf16 %v942, %v941
    %v964 = vpack.c.bf16 %v944, %v943
    %v965 = vpack.c.bf16 %v946, %v945
    %v966 = vpack.c.bf16 %v948, %v947
    %v967 = vpack.c.bf16 %v950, %v949
    %v968 = vpack.c.bf16 %v952, %v951
    %v969 = vld [vmem:[#allocation11] sm:$0xf]
    %v970 = vld [vmem:[#allocation11 + $0x4] sm:$0xf]
    %v971 = vld [vmem:[#allocation11 + $0x8] sm:$0xf]
    %v972 = vld [vmem:[#allocation11 + $0xc] sm:$0xf]
    %v973 = vld [vmem:[#allocation11 + $0x10] sm:$0xf]
    %v974 = vld [vmem:[#allocation11 + $0x14] sm:$0xf]
    %v975 = vld [vmem:[#allocation11 + $0x18] sm:$0xf]
    %v976 = vld [vmem:[#allocation11 + $0x1c] sm:$0xf]
    %v977 = vld [vmem:[#allocation11 + $0x20] sm:$0xf]
    %v978 = vld [vmem:[#allocation11 + $0x24] sm:$0xf]
    %v979 = vld [vmem:[#allocation11 + $0x28] sm:$0xf]
    %v980 = vld [vmem:[#allocation11 + $0x2c] sm:$0xf]
    %v981 = vld [vmem:[#allocation11 + $0x30] sm:$0xf]
    %v982 = vld [vmem:[#allocation11 + $0x34] sm:$0xf]
    %v983 = vld [vmem:[#allocation11 + $0x38] sm:$0xf]
    %v984 = vld [vmem:[#allocation11 + $0x3c] sm:$0xf]
    %v985 = vld [vmem:[#allocation13] sm:$0x1]
    %v987 = vlaneseq
    %v988 = vshrl.u32 %v987, 7
    %v989 = vsub.s32 0, %v988
    %v990 = vrot.slane %v985, %v989
    %v1008 = vunpack.c.l.b16 %v969
    %v1009 = vunpack.c.l.b16 %v970
    %v1010 = vunpack.c.l.b16 %v971
    %v1011 = vunpack.c.l.b16 %v972
    %v1012 = vunpack.c.l.b16 %v973
    %v1013 = vunpack.c.l.b16 %v974
    %v1014 = vunpack.c.l.b16 %v975
    %v1015 = vunpack.c.l.b16 %v976
    %v1016 = vunpack.c.l.b16 %v977
    %v1017 = vunpack.c.l.b16 %v978
    %v1018 = vunpack.c.l.b16 %v979
    %v1019 = vunpack.c.l.b16 %v980
    %v1020 = vunpack.c.l.b16 %v981
    %v1021 = vunpack.c.l.b16 %v982
    %v1022 = vunpack.c.l.b16 %v983
    %v1023 = vunpack.c.l.b16 %v984
    %v1024 = vpack.c.b16 %v1009, %v1008
    %v1025 = vpack.c.b16 %v1011, %v1010
    %v1026 = vpack.c.b16 %v1013, %v1012
    %v1027 = vpack.c.b16 %v1015, %v1014
    %v1028 = vpack.c.b16 %v1017, %v1016
    %v1029 = vpack.c.b16 %v1019, %v1018
    %v1030 = vpack.c.b16 %v1021, %v1020
    %v1031 = vpack.c.b16 %v1023, %v1022
    %1040 = vmatprep.subr.bf16.mxu0 0
    %1041 = vmatpush1.bf16.msra.mxu0 %v1024
    %1042 = vmatprep.subr.bf16.mxu0 0
    %1043 = vmatpush1.bf16.msra.mxu0 %v1025
    %1044 = vmatprep.subr.bf16.mxu0 0
    %1045 = vmatpush1.bf16.msra.mxu0 %v1026
    %1046 = vmatprep.subr.bf16.mxu0 0
    %1047 = vmatpush1.bf16.msra.mxu0 %v1027
    %1048 = vmatprep.subr.bf16.mxu0 0
    %1049 = vmatpush1.bf16.msra.mxu0 %v1028
    %1050 = vmatprep.subr.bf16.mxu0 0
    %1051 = vmatpush1.bf16.msra.mxu0 %v1029
    %1052 = vmatprep.subr.bf16.mxu0 0
    %1053 = vmatpush1.bf16.msra.mxu0 %v1030
    %1054 = vmatprep.subr.bf16.mxu0 0
    %1055 = vmatpush1.bf16.msra.mxu0 %v1031
    %1056 = vmatprep.subr.bf16.mxu0 0
    %1057 = vmatpush1.bf16.msra.mxu0 0
    %1058 = vmatprep.subr.bf16.mxu0 0
    %1059 = vmatpush1.bf16.msra.mxu0 0
    %1060 = vmatprep.subr.bf16.mxu0 0
    %1061 = vmatpush1.bf16.msra.mxu0 0
    %1062 = vmatprep.subr.bf16.mxu0 0
    %1063 = vmatpush1.bf16.msra.mxu0 0
    %1064 = vmatprep.subr.bf16.mxu0 0
    %1065 = vmatpush1.bf16.msra.mxu0 0
    %1066 = vmatprep.subr.bf16.mxu0 0
    %1067 = vmatpush1.bf16.msra.mxu0 0
    %1068 = vmatprep.subr.bf16.mxu0 0
    %1069 = vmatpush1.bf16.msra.mxu0 0
    %1070 = vmatprep.subr.bf16.mxu0 0
    %1071 = vmatpush1.bf16.msra.mxu0 0
    %1072 = vmatprep.mubr.bf16.mxu0 0
    %1073 = vmatmul.mubr.bf16.gmra.mrb[0].mxu0 %v953
    %v1074 = vpop.f32.mrb[0].mxu0
    %v1075 = vadd.f32 %v990, %v1074
    %v1076 = vpop.f32.mrb[0].mxu0
    %v1077 = vpop.f32.mrb[0].mxu0
    %v1078 = vadd.f32 %v990, %v1077
    %v1079 = vpop.f32.mrb[0].mxu0
    %1080 = vmatprep.mubr.bf16.mxu0 0
    %1081 = vmatmul.mubr.bf16.gmra.mrb[0].mxu0 %v954
    %v1082 = vpop.f32.mrb[0].mxu0
    %v1083 = vadd.f32 %v990, %v1082
    %v1084 = vpop.f32.mrb[0].mxu0
    %v1085 = vpop.f32.mrb[0].mxu0
    %v1086 = vadd.f32 %v990, %v1085
    %v1087 = vpop.f32.mrb[0].mxu0
    %1088 = vmatprep.mubr.bf16.mxu0 0
    %1089 = vmatmul.mubr.bf16.gmra.mrb[0].mxu0 %v955
    %v1090 = vpop.f32.mrb[0].mxu0
    %v1091 = vadd.f32 %v990, %v1090
    %v1092 = vpop.f32.mrb[0].mxu0
    %v1093 = vpop.f32.mrb[0].mxu0
    %v1094 = vadd.f32 %v990, %v1093
    %v1095 = vpop.f32.mrb[0].mxu0
    %1096 = vmatprep.mubr.bf16.mxu0 0
    %1097 = vmatmul.mubr.bf16.gmra.mrb[0].mxu0 %v956
    %v1098 = vpop.f32.mrb[0].mxu0
    %v1099 = vadd.f32 %v990, %v1098
    %v1100 = vpop.f32.mrb[0].mxu0
    %v1101 = vpop.f32.mrb[0].mxu0
    %v1102 = vadd.f32 %v990, %v1101
    %v1103 = vpop.f32.mrb[0].mxu0
    %1104 = vmatprep.mubr.bf16.mxu0 0
    %1105 = vmatmul.mubr.bf16.gmra.mrb[0].mxu0 %v957
    %v1106 = vpop.f32.mrb[0].mxu0
    %v1107 = vadd.f32 %v990, %v1106
    %v1108 = vpop.f32.mrb[0].mxu0
    %v1109 = vpop.f32.mrb[0].mxu0
    %v1110 = vadd.f32 %v990, %v1109
    %v1111 = vpop.f32.mrb[0].mxu0
    %1112 = vmatprep.mubr.bf16.mxu0 0
    %1113 = vmatmul.mubr.bf16.gmra.mrb[0].mxu0 %v958
    %v1114 = vpop.f32.mrb[0].mxu0
    %v1115 = vadd.f32 %v990, %v1114
    %v1116 = vpop.f32.mrb[0].mxu0
    %v1117 = vpop.f32.mrb[0].mxu0
    %v1118 = vadd.f32 %v990, %v1117
    %v1119 = vpop.f32.mrb[0].mxu0
    %1120 = vmatprep.mubr.bf16.mxu0 0
    %1121 = vmatmul.mubr.bf16.gmra.mrb[0].mxu0 %v959
    %v1122 = vpop.f32.mrb[0].mxu0
    %v1123 = vadd.f32 %v990, %v1122
    %v1124 = vpop.f32.mrb[0].mxu0
    %v1125 = vpop.f32.mrb[0].mxu0
    %v1126 = vadd.f32 %v990, %v1125
    %v1127 = vpop.f32.mrb[0].mxu0
    %1128 = vmatprep.mubr.bf16.mxu0 0
    %1129 = vmatmul.mubr.bf16.gmra.mrb[0].mxu0 %v960
    %v1130 = vpop.f32.mrb[0].mxu0
    %v1131 = vadd.f32 %v990, %v1130
    %v1132 = vpop.f32.mrb[0].mxu0
    %v1133 = vpop.f32.mrb[0].mxu0
    %v1134 = vadd.f32 %v990, %v1133
    %v1135 = vpop.f32.mrb[0].mxu0
    %1136 = vmatprep.mubr.bf16.mxu0 0
    %1137 = vmatmul.mubr.bf16.gmra.mrb[0].mxu0 %v961
    %v1138 = vpop.f32.mrb[0].mxu0
    %v1139 = vadd.f32 %v990, %v1138
    %v1140 = vpop.f32.mrb[0].mxu0
    %v1141 = vpop.f32.mrb[0].mxu0
    %v1142 = vadd.f32 %v990, %v1141
    %v1143 = vpop.f32.mrb[0].mxu0
    %1144 = vmatprep.mubr.bf16.mxu0 0
    %1145 = vmatmul.mubr.bf16.gmra.mrb[0].mxu0 %v962
    %v1146 = vpop.f32.mrb[0].mxu0
    %v1147 = vadd.f32 %v990, %v1146
    %v1148 = vpop.f32.mrb[0].mxu0
    %v1149 = vpop.f32.mrb[0].mxu0
    %v1150 = vadd.f32 %v990, %v1149
    %v1151 = vpop.f32.mrb[0].mxu0
    %1152 = vmatprep.mubr.bf16.mxu0 0
    %1153 = vmatmul.mubr.bf16.gmra.mrb[0].mxu0 %v963
    %v1154 = vpop.f32.mrb[0].mxu0
    %v1155 = vadd.f32 %v990, %v1154
    %v1156 = vpop.f32.mrb[0].mxu0
    %v1157 = vpop.f32.mrb[0].mxu0
    %v1158 = vadd.f32 %v990, %v1157
    %v1159 = vpop.f32.mrb[0].mxu0
    %1160 = vmatprep.mubr.bf16.mxu0 0
    %1161 = vmatmul.mubr.bf16.gmra.mrb[0].mxu0 %v964
    %v1162 = vpop.f32.mrb[0].mxu0
    %v1163 = vadd.f32 %v990, %v1162
    %v1164 = vpop.f32.mrb[0].mxu0
    %v1165 = vpop.f32.mrb[0].mxu0
    %v1166 = vadd.f32 %v990, %v1165
    %v1167 = vpop.f32.mrb[0].mxu0
    %1168 = vmatprep.mubr.bf16.mxu0 0
    %1169 = vmatmul.mubr.bf16.gmra.mrb[0].mxu0 %v965
    %v1170 = vpop.f32.mrb[0].mxu0
    %v1171 = vadd.f32 %v990, %v1170
    %v1172 = vpop.f32.mrb[0].mxu0
    %v1173 = vpop.f32.mrb[0].mxu0
    %v1174 = vadd.f32 %v990, %v1173
    %v1175 = vpop.f32.mrb[0].mxu0
    %1176 = vmatprep.mubr.bf16.mxu0 0
    %1177 = vmatmul.mubr.bf16.gmra.mrb[0].mxu0 %v966
    %v1178 = vpop.f32.mrb[0].mxu0
    %v1179 = vadd.f32 %v990, %v1178
    %v1180 = vpop.f32.mrb[0].mxu0
    %v1181 = vpop.f32.mrb[0].mxu0
    %v1182 = vadd.f32 %v990, %v1181
    %v1183 = vpop.f32.mrb[0].mxu0
    %1184 = vmatprep.mubr.bf16.mxu0 0
    %1185 = vmatmul.mubr.bf16.gmra.mrb[0].mxu0 %v967
    %v1186 = vpop.f32.mrb[0].mxu0
    %v1187 = vadd.f32 %v990, %v1186
    %v1188 = vpop.f32.mrb[0].mxu0
    %v1189 = vpop.f32.mrb[0].mxu0
    %v1190 = vadd.f32 %v990, %v1189
    %v1191 = vpop.f32.mrb[0].mxu0
    %1192 = vmatprep.mubr.bf16.mxu0 0
    %1193 = vmatmul.mubr.bf16.gmra.mrb[0].mxu0 %v968
    %v1194 = vpop.f32.mrb[0].mxu0
    %v1195 = vadd.f32 %v990, %v1194
    %v1196 = vpop.f32.mrb[0].mxu0
    %v1197 = vpop.f32.mrb[0].mxu0
    %v1198 = vadd.f32 %v990, %v1197
    %v1199 = vpop.f32.mrb[0].mxu0
    %1200 = vdwg.mxu0
    %v1201 = vtanh.pop %v1075
    %v1202 = vtanh.pop %v1078
    %v1203 = vtanh.pop %v1083
    %v1204 = vtanh.pop %v1086
    %v1205 = vtanh.pop %v1091
    %v1206 = vtanh.pop %v1094
    %v1207 = vtanh.pop %v1099
    %v1208 = vtanh.pop %v1102
    %v1209 = vtanh.pop %v1107
    %v1210 = vtanh.pop %v1110
    %v1211 = vtanh.pop %v1115
    %v1212 = vtanh.pop %v1118
    %v1213 = vtanh.pop %v1123
    %v1214 = vtanh.pop %v1126
    %v1215 = vtanh.pop %v1131
    %v1216 = vtanh.pop %v1134
    %v1217 = vtanh.pop %v1139
    %v1218 = vtanh.pop %v1142
    %v1219 = vtanh.pop %v1147
    %v1220 = vtanh.pop %v1150
    %v1221 = vtanh.pop %v1155
    %v1222 = vtanh.pop %v1158
    %v1223 = vtanh.pop %v1163
    %v1224 = vtanh.pop %v1166
    %v1225 = vtanh.pop %v1171
    %v1226 = vtanh.pop %v1174
    %v1227 = vtanh.pop %v1179
    %v1228 = vtanh.pop %v1182
    %v1229 = vtanh.pop %v1187
    %v1230 = vtanh.pop %v1190
    %v1231 = vtanh.pop %v1195
    %v1232 = vtanh.pop %v1198
    %v1233 = vmul.f32 %v1201, %v305
    %v1234 = vmul.f32 %v1202, %v306
    %v1235 = vmul.f32 %v1203, %v307
    %v1236 = vmul.f32 %v1204, %v308
    %v1237 = vmul.f32 %v1205, %v309
    %v1238 = vmul.f32 %v1206, %v310
    %v1239 = vmul.f32 %v1207, %v311
    %v1240 = vmul.f32 %v1208, %v312
    %v1241 = vmul.f32 %v1209, %v313
    %v1242 = vmul.f32 %v1210, %v314
    %v1243 = vmul.f32 %v1211, %v315
    %v1244 = vmul.f32 %v1212, %v316
    %v1245 = vmul.f32 %v1213, %v317
    %v1246 = vmul.f32 %v1214, %v318
    %v1247 = vmul.f32 %v1215, %v319
    %v1248 = vmul.f32 %v1216, %v320
    %v1249 = vmul.f32 %v1217, %v321
    %v1250 = vmul.f32 %v1218, %v322
    %v1251 = vmul.f32 %v1219, %v323
    %v1252 = vmul.f32 %v1220, %v324
    %v1253 = vmul.f32 %v1221, %v325
    %v1254 = vmul.f32 %v1222, %v326
    %v1255 = vmul.f32 %v1223, %v327
    %v1256 = vmul.f32 %v1224, %v328
    %v1257 = vmul.f32 %v1225, %v329
    %v1258 = vmul.f32 %v1226, %v330
    %v1259 = vmul.f32 %v1227, %v331
    %v1260 = vmul.f32 %v1228, %v332
    %v1261 = vmul.f32 %v1229, %v333
    %v1262 = vmul.f32 %v1230, %v334
    %v1263 = vmul.f32 %v1231, %v335
    %v1264 = vmul.f32 %v1232, %v336
    %v1265 = vadd.f32 %v1233, %v1234
    %v1266 = vadd.f32 %v1265, %v1235
    %v1267 = vadd.f32 %v1266, %v1236
    %v1268 = vadd.f32 %v1267, %v1237
    %v1269 = vadd.f32 %v1268, %v1238
    %v1270 = vadd.f32 %v1269, %v1239
    %v1271 = vadd.f32 %v1270, %v1240
    %v1272 = vadd.f32 %v1271, %v1241
    %v1273 = vadd.f32 %v1272, %v1242
    %v1274 = vadd.f32 %v1273, %v1243
    %v1275 = vadd.f32 %v1274, %v1244
    %v1276 = vadd.f32 %v1275, %v1245
    %v1277 = vadd.f32 %v1276, %v1246
    %v1278 = vadd.f32 %v1277, %v1247
    %v1279 = vadd.f32 %v1278, %v1248
    %v1280 = vadd.f32 %v1279, %v1249
    %v1281 = vadd.f32 %v1280, %v1250
    %v1282 = vadd.f32 %v1281, %v1251
    %v1283 = vadd.f32 %v1282, %v1252
    %v1284 = vadd.f32 %v1283, %v1253
    %v1285 = vadd.f32 %v1284, %v1254
    %v1286 = vadd.f32 %v1285, %v1255
    %v1287 = vadd.f32 %v1286, %v1256
    %v1288 = vadd.f32 %v1287, %v1257
    %v1289 = vadd.f32 %v1288, %v1258
    %v1290 = vadd.f32 %v1289, %v1259
    %v1291 = vadd.f32 %v1290, %v1260
    %v1292 = vadd.f32 %v1291, %v1261
    %v1293 = vadd.f32 %v1292, %v1262
    %v1294 = vadd.f32 %v1293, %v1263
    %v1295 = vadd.f32 %v1294, %v1264
    %v1296 = vrot.slane %v1295, 4
    %v1297 = vadd.f32 %v1295, %v1296
    %v1298 = vrot.slane %v1297, 2
    %v1299 = vadd.f32 %v1297, %v1298
    %v1300 = vrot.slane %v1299, 1
    %v1301 = vadd.f32 %v1299, %v1300
    %v1302 = vmul.f32 %v1301, 0.004
    %v1303 = vsub.f32 %v1201, %v1302
    %v1304 = vsub.f32 %v1202, %v1302
    %v1305 = vsub.f32 %v1203, %v1302
    %v1306 = vsub.f32 %v1204, %v1302
    %v1307 = vsub.f32 %v1205, %v1302
    %v1308 = vsub.f32 %v1206, %v1302
    %v1309 = vsub.f32 %v1207, %v1302
    %v1310 = vsub.f32 %v1208, %v1302
    %v1311 = vsub.f32 %v1209, %v1302
    %v1312 = vsub.f32 %v1210, %v1302
    %v1313 = vsub.f32 %v1211, %v1302
    %v1314 = vsub.f32 %v1212, %v1302
    %v1315 = vsub.f32 %v1213, %v1302
    %v1316 = vsub.f32 %v1214, %v1302
    %v1317 = vsub.f32 %v1215, %v1302
    %v1318 = vsub.f32 %v1216, %v1302
    %v1319 = vsub.f32 %v1217, %v1302
    %v1320 = vsub.f32 %v1218, %v1302
    %v1321 = vsub.f32 %v1219, %v1302
    %v1322 = vsub.f32 %v1220, %v1302
    %v1323 = vsub.f32 %v1221, %v1302
    %v1324 = vsub.f32 %v1222, %v1302
    %v1325 = vsub.f32 %v1223, %v1302
    %v1326 = vsub.f32 %v1224, %v1302
    %v1327 = vsub.f32 %v1225, %v1302
    %v1328 = vsub.f32 %v1226, %v1302
    %v1329 = vsub.f32 %v1227, %v1302
    %v1330 = vsub.f32 %v1228, %v1302
    %v1331 = vsub.f32 %v1229, %v1302
    %v1332 = vsub.f32 %v1230, %v1302
    %v1333 = vsub.f32 %v1231, %v1302
    %v1334 = vsub.f32 %v1232, %v1302
    %v1335 = vmul.f32 %v1303, %v305
    %v1336 = vmul.f32 %v1304, %v306
    %v1337 = vmul.f32 %v1305, %v307
    %v1338 = vmul.f32 %v1306, %v308
    %v1339 = vmul.f32 %v1307, %v309
    %v1340 = vmul.f32 %v1308, %v310
    %v1341 = vmul.f32 %v1309, %v311
    %v1342 = vmul.f32 %v1310, %v312
    %v1343 = vmul.f32 %v1311, %v313
    %v1344 = vmul.f32 %v1312, %v314
    %v1345 = vmul.f32 %v1313, %v315
    %v1346 = vmul.f32 %v1314, %v316
    %v1347 = vmul.f32 %v1315, %v317
    %v1348 = vmul.f32 %v1316, %v318
    %v1349 = vmul.f32 %v1317, %v319
    %v1350 = vmul.f32 %v1318, %v320
    %v1351 = vmul.f32 %v1319, %v321
    %v1352 = vmul.f32 %v1320, %v322
    %v1353 = vmul.f32 %v1321, %v323
    %v1354 = vmul.f32 %v1322, %v324
    %v1355 = vmul.f32 %v1323, %v325
    %v1356 = vmul.f32 %v1324, %v326
    %v1357 = vmul.f32 %v1325, %v327
    %v1358 = vmul.f32 %v1326, %v328
    %v1359 = vmul.f32 %v1327, %v329
    %v1360 = vmul.f32 %v1328, %v330
    %v1361 = vmul.f32 %v1329, %v331
    %v1362 = vmul.f32 %v1330, %v332
    %v1363 = vmul.f32 %v1331, %v333
    %v1364 = vmul.f32 %v1332, %v334
    %v1365 = vmul.f32 %v1333, %v335
    %v1366 = vmul.f32 %v1334, %v336
    %v1367 = vmul.f32 %v1335, %v1335
    %v1368 = vmul.f32 %v1336, %v1336
    %v1369 = vmul.f32 %v1337, %v1337
    %v1370 = vmul.f32 %v1338, %v1338
    %v1371 = vmul.f32 %v1339, %v1339
    %v1372 = vmul.f32 %v1340, %v1340
    %v1373 = vmul.f32 %v1341, %v1341
    %v1374 = vmul.f32 %v1342, %v1342
    %v1375 = vmul.f32 %v1343, %v1343
    %v1376 = vmul.f32 %v1344, %v1344
    %v1377 = vmul.f32 %v1345, %v1345
    %v1378 = vmul.f32 %v1346, %v1346
    %v1379 = vmul.f32 %v1347, %v1347
    %v1380 = vmul.f32 %v1348, %v1348
    %v1381 = vmul.f32 %v1349, %v1349
    %v1382 = vmul.f32 %v1350, %v1350
    %v1383 = vmul.f32 %v1351, %v1351
    %v1384 = vmul.f32 %v1352, %v1352
    %v1385 = vmul.f32 %v1353, %v1353
    %v1386 = vmul.f32 %v1354, %v1354
    %v1387 = vmul.f32 %v1355, %v1355
    %v1388 = vmul.f32 %v1356, %v1356
    %v1389 = vmul.f32 %v1357, %v1357
    %v1390 = vmul.f32 %v1358, %v1358
    %v1391 = vmul.f32 %v1359, %v1359
    %v1392 = vmul.f32 %v1360, %v1360
    %v1393 = vmul.f32 %v1361, %v1361
    %v1394 = vmul.f32 %v1362, %v1362
    %v1395 = vmul.f32 %v1363, %v1363
    %v1396 = vmul.f32 %v1364, %v1364
    %v1397 = vmul.f32 %v1365, %v1365
    %v1398 = vmul.f32 %v1366, %v1366
    %v1399 = vadd.f32 %v1367, %v1368
    %v1400 = vadd.f32 %v1399, %v1369
    %v1401 = vadd.f32 %v1400, %v1370
    %v1402 = vadd.f32 %v1401, %v1371
    %v1403 = vadd.f32 %v1402, %v1372
    %v1404 = vadd.f32 %v1403, %v1373
    %v1405 = vadd.f32 %v1404, %v1374
    %v1406 = vadd.f32 %v1405, %v1375
    %v1407 = vadd.f32 %v1406, %v1376
    %v1408 = vadd.f32 %v1407, %v1377
    %v1409 = vadd.f32 %v1408, %v1378
    %v1410 = vadd.f32 %v1409, %v1379
    %v1411 = vadd.f32 %v1410, %v1380
    %v1412 = vadd.f32 %v1411, %v1381
    %v1413 = vadd.f32 %v1412, %v1382
    %v1414 = vadd.f32 %v1413, %v1383
    %v1415 = vadd.f32 %v1414, %v1384
    %v1416 = vadd.f32 %v1415, %v1385
    %v1417 = vadd.f32 %v1416, %v1386
    %v1418 = vadd.f32 %v1417, %v1387
    %v1419 = vadd.f32 %v1418, %v1388
    %v1420 = vadd.f32 %v1419, %v1389
    %v1421 = vadd.f32 %v1420, %v1390
    %v1422 = vadd.f32 %v1421, %v1391
    %v1423 = vadd.f32 %v1422, %v1392
    %v1424 = vadd.f32 %v1423, %v1393
    %v1425 = vadd.f32 %v1424, %v1394
    %v1426 = vadd.f32 %v1425, %v1395
    %v1427 = vadd.f32 %v1426, %v1396
    %v1428 = vadd.f32 %v1427, %v1397
    %v1429 = vadd.f32 %v1428, %v1398
    %v1430 = vrot.slane %v1429, 4
    %v1431 = vadd.f32 %v1429, %v1430
    %v1432 = vrot.slane %v1431, 2
    %v1433 = vadd.f32 %v1431, %v1432
    %v1434 = vrot.slane %v1433, 1
    %v1435 = vadd.f32 %v1433, %v1434
    %v1436 = vmul.f32 %v1435, 0.004
    %v1437 = vadd.f32 %v1436, 1e-05
    %v1438 = vrsqrt.pop %v1437
    %v1439 = vmul.f32 %v1303, %v1438
    %v1440 = vmul.f32 %v1304, %v1438
    %v1441 = vmul.f32 %v1305, %v1438
    %v1442 = vmul.f32 %v1306, %v1438
    %v1443 = vmul.f32 %v1307, %v1438
    %v1444 = vmul.f32 %v1308, %v1438
    %v1445 = vmul.f32 %v1309, %v1438
    %v1446 = vmul.f32 %v1310, %v1438
    %v1447 = vmul.f32 %v1311, %v1438
    %v1448 = vmul.f32 %v1312, %v1438
    %v1449 = vmul.f32 %v1313, %v1438
    %v1450 = vmul.f32 %v1314, %v1438
    %v1451 = vmul.f32 %v1315, %v1438
    %v1452 = vmul.f32 %v1316, %v1438
    %v1453 = vmul.f32 %v1317, %v1438
    %v1454 = vmul.f32 %v1318, %v1438
    %v1455 = vmul.f32 %v1319, %v1438
    %v1456 = vmul.f32 %v1320, %v1438
    %v1457 = vmul.f32 %v1321, %v1438
    %v1458 = vmul.f32 %v1322, %v1438
    %v1459 = vmul.f32 %v1323, %v1438
    %v1460 = vmul.f32 %v1324, %v1438
    %v1461 = vmul.f32 %v1325, %v1438
    %v1462 = vmul.f32 %v1326, %v1438
    %v1463 = vmul.f32 %v1327, %v1438
    %v1464 = vmul.f32 %v1328, %v1438
    %v1465 = vmul.f32 %v1329, %v1438
    %v1466 = vmul.f32 %v1330, %v1438
    %v1467 = vmul.f32 %v1331, %v1438
    %v1468 = vmul.f32 %v1332, %v1438
    %v1469 = vmul.f32 %v1333, %v1438
    %v1470 = vmul.f32 %v1334, %v1438
    %v1471 = vmul.f32 %v1439, %v881
    %v1472 = vmul.f32 %v1440, %v881
    %v1473 = vmul.f32 %v1441, %v881
    %v1474 = vmul.f32 %v1442, %v881
    %v1475 = vmul.f32 %v1443, %v881
    %v1476 = vmul.f32 %v1444, %v881
    %v1477 = vmul.f32 %v1445, %v881
    %v1478 = vmul.f32 %v1446, %v881
    %v1479 = vmul.f32 %v1447, %v881
    %v1480 = vmul.f32 %v1448, %v881
    %v1481 = vmul.f32 %v1449, %v881
    %v1482 = vmul.f32 %v1450, %v881
    %v1483 = vmul.f32 %v1451, %v881
    %v1484 = vmul.f32 %v1452, %v881
    %v1485 = vmul.f32 %v1453, %v881
    %v1486 = vmul.f32 %v1454, %v881
    %v1487 = vmul.f32 %v1455, %v881
    %v1488 = vmul.f32 %v1456, %v881
    %v1489 = vmul.f32 %v1457, %v881
    %v1490 = vmul.f32 %v1458, %v881
    %v1491 = vmul.f32 %v1459, %v881
    %v1492 = vmul.f32 %v1460, %v881
    %v1493 = vmul.f32 %v1461, %v881
    %v1494 = vmul.f32 %v1462, %v881
    %v1495 = vmul.f32 %v1463, %v881
    %v1496 = vmul.f32 %v1464, %v881
    %v1497 = vmul.f32 %v1465, %v881
    %v1498 = vmul.f32 %v1466, %v881
    %v1499 = vmul.f32 %v1467, %v881
    %v1500 = vmul.f32 %v1468, %v881
    %v1501 = vmul.f32 %v1469, %v881
    %v1502 = vmul.f32 %v1470, %v881
    %v1503 = vadd.f32 %v1471, %v919
    %v1504 = vadd.f32 %v1472, %v919
    %v1505 = vadd.f32 %v1473, %v919
    %v1506 = vadd.f32 %v1474, %v919
    %v1507 = vadd.f32 %v1475, %v919
    %v1508 = vadd.f32 %v1476, %v919
    %v1509 = vadd.f32 %v1477, %v919
    %v1510 = vadd.f32 %v1478, %v919
    %v1511 = vadd.f32 %v1479, %v919
    %v1512 = vadd.f32 %v1480, %v919
    %v1513 = vadd.f32 %v1481, %v919
    %v1514 = vadd.f32 %v1482, %v919
    %v1515 = vadd.f32 %v1483, %v919
    %v1516 = vadd.f32 %v1484, %v919
    %v1517 = vadd.f32 %v1485, %v919
    %v1518 = vadd.f32 %v1486, %v919
    %v1519 = vadd.f32 %v1487, %v919
    %v1520 = vadd.f32 %v1488, %v919
    %v1521 = vadd.f32 %v1489, %v919
    %v1522 = vadd.f32 %v1490, %v919
    %v1523 = vadd.f32 %v1491, %v919
    %v1524 = vadd.f32 %v1492, %v919
    %v1525 = vadd.f32 %v1493, %v919
    %v1526 = vadd.f32 %v1494, %v919
    %v1527 = vadd.f32 %v1495, %v919
    %v1528 = vadd.f32 %v1496, %v919
    %v1529 = vadd.f32 %v1497, %v919
    %v1530 = vadd.f32 %v1498, %v919
    %v1531 = vadd.f32 %v1499, %v919
    %v1532 = vadd.f32 %v1500, %v919
    %v1533 = vadd.f32 %v1501, %v919
    %v1534 = vadd.f32 %v1502, %v919
    %v1535 = vpack.c.bf16 %v1504, %v1503
    %v1536 = vpack.c.bf16 %v1506, %v1505
    %v1537 = vpack.c.bf16 %v1508, %v1507
    %v1538 = vpack.c.bf16 %v1510, %v1509
    %v1539 = vpack.c.bf16 %v1512, %v1511
    %v1540 = vpack.c.bf16 %v1514, %v1513
    %v1541 = vpack.c.bf16 %v1516, %v1515
    %v1542 = vpack.c.bf16 %v1518, %v1517
    %v1543 = vpack.c.bf16 %v1520, %v1519
    %v1544 = vpack.c.bf16 %v1522, %v1521
    %v1545 = vpack.c.bf16 %v1524, %v1523
    %v1546 = vpack.c.bf16 %v1526, %v1525
    %v1547 = vpack.c.bf16 %v1528, %v1527
    %v1548 = vpack.c.bf16 %v1530, %v1529
    %v1549 = vpack.c.bf16 %v1532, %v1531
    %v1550 = vpack.c.bf16 %v1534, %v1533
    %v1551 = vld [vmem:[#allocation14] sm:$0xf]
    %v1552 = vld [vmem:[#allocation14 + $0x4] sm:$0xf]
    %v1553 = vld [vmem:[#allocation14 + $0x8] sm:$0xf]
    %v1554 = vld [vmem:[#allocation14 + $0xc] sm:$0xf]
    %v1555 = vld [vmem:[#allocation14 + $0x10] sm:$0xf]
    %v1556 = vld [vmem:[#allocation14 + $0x14] sm:$0xf]
    %v1557 = vld [vmem:[#allocation14 + $0x18] sm:$0xf]
    %v1558 = vld [vmem:[#allocation14 + $0x1c] sm:$0xf]
    %v1559 = vld [vmem:[#allocation14 + $0x20] sm:$0xf]
    %v1560 = vld [vmem:[#allocation14 + $0x24] sm:$0xf]
    %v1561 = vld [vmem:[#allocation14 + $0x28] sm:$0xf]
    %v1562 = vld [vmem:[#allocation14 + $0x2c] sm:$0xf]
    %v1563 = vld [vmem:[#allocation14 + $0x30] sm:$0xf]
    %v1564 = vld [vmem:[#allocation14 + $0x34] sm:$0xf]
    %v1565 = vld [vmem:[#allocation14 + $0x38] sm:$0xf]
    %v1566 = vld [vmem:[#allocation14 + $0x3c] sm:$0xf]
    %v1567 = vld [vmem:[#allocation16] sm:$0x1]
    %v1569 = vlaneseq
    %v1570 = vshrl.u32 %v1569, 7
    %v1571 = vsub.s32 0, %v1570
    %v1572 = vrot.slane %v1567, %v1571
    %v1590 = vunpack.c.l.b16 %v1551
    %v1591 = vunpack.c.l.b16 %v1552
    %v1592 = vunpack.c.l.b16 %v1553
    %v1593 = vunpack.c.l.b16 %v1554
    %v1594 = vunpack.c.l.b16 %v1555
    %v1595 = vunpack.c.l.b16 %v1556
    %v1596 = vunpack.c.l.b16 %v1557
    %v1597 = vunpack.c.l.b16 %v1558
    %v1598 = vunpack.c.l.b16 %v1559
    %v1599 = vunpack.c.l.b16 %v1560
    %v1600 = vunpack.c.l.b16 %v1561
    %v1601 = vunpack.c.l.b16 %v1562
    %v1602 = vunpack.c.l.b16 %v1563
    %v1603 = vunpack.c.l.b16 %v1564
    %v1604 = vunpack.c.l.b16 %v1565
    %v1605 = vunpack.c.l.b16 %v1566
    %v1606 = vpack.c.b16 %v1591, %v1590
    %v1607 = vpack.c.b16 %v1593, %v1592
    %v1608 = vpack.c.b16 %v1595, %v1594
    %v1609 = vpack.c.b16 %v1597, %v1596
    %v1610 = vpack.c.b16 %v1599, %v1598
    %v1611 = vpack.c.b16 %v1601, %v1600
    %v1612 = vpack.c.b16 %v1603, %v1602
    %v1613 = vpack.c.b16 %v1605, %v1604
    %1622 = vmatprep.subr.bf16.mxu0 0
    %1623 = vmatpush1.bf16.msra.mxu0 %v1606
    %1624 = vmatprep.subr.bf16.mxu0 0
    %1625 = vmatpush1.bf16.msra.mxu0 %v1607
    %1626 = vmatprep.subr.bf16.mxu0 0
    %1627 = vmatpush1.bf16.msra.mxu0 %v1608
    %1628 = vmatprep.subr.bf16.mxu0 0
    %1629 = vmatpush1.bf16.msra.mxu0 %v1609
    %1630 = vmatprep.subr.bf16.mxu0 0
    %1631 = vmatpush1.bf16.msra.mxu0 %v1610
    %1632 = vmatprep.subr.bf16.mxu0 0
    %1633 = vmatpush1.bf16.msra.mxu0 %v1611
    %1634 = vmatprep.subr.bf16.mxu0 0
    %1635 = vmatpush1.bf16.msra.mxu0 %v1612
    %1636 = vmatprep.subr.bf16.mxu0 0
    %1637 = vmatpush1.bf16.msra.mxu0 %v1613
    %1638 = vmatprep.subr.bf16.mxu0 0
    %1639 = vmatpush1.bf16.msra.mxu0 0
    %1640 = vmatprep.subr.bf16.mxu0 0
    %1641 = vmatpush1.bf16.msra.mxu0 0
    %1642 = vmatprep.subr.bf16.mxu0 0
    %1643 = vmatpush1.bf16.msra.mxu0 0
    %1644 = vmatprep.subr.bf16.mxu0 0
    %1645 = vmatpush1.bf16.msra.mxu0 0
    %1646 = vmatprep.subr.bf16.mxu0 0
    %1647 = vmatpush1.bf16.msra.mxu0 0
    %1648 = vmatprep.subr.bf16.mxu0 0
    %1649 = vmatpush1.bf16.msra.mxu0 0
    %1650 = vmatprep.subr.bf16.mxu0 0
    %1651 = vmatpush1.bf16.msra.mxu0 0
    %1652 = vmatprep.subr.bf16.mxu0 0
    %1653 = vmatpush1.bf16.msra.mxu0 0
    %1654 = vmatprep.mubr.bf16.mxu0 0
    %1655 = vmatmul.mubr.bf16.gmra.mrb[0].mxu0 %v1535
    %v1656 = vpop.f32.mrb[0].mxu0
    %v1657 = vadd.f32 %v1572, %v1656
    %v1658 = vpop.f32.mrb[0].mxu0
    %v1659 = vpop.f32.mrb[0].mxu0
    %v1660 = vadd.f32 %v1572, %v1659
    %v1661 = vpop.f32.mrb[0].mxu0
    %1662 = vmatprep.mubr.bf16.mxu0 0
    %1663 = vmatmul.mubr.bf16.gmra.mrb[0].mxu0 %v1536
    %v1664 = vpop.f32.mrb[0].mxu0
    %v1665 = vadd.f32 %v1572, %v1664
    %v1666 = vpop.f32.mrb[0].mxu0
    %v1667 = vpop.f32.mrb[0].mxu0
    %v1668 = vadd.f32 %v1572, %v1667
    %v1669 = vpop.f32.mrb[0].mxu0
    %1670 = vmatprep.mubr.bf16.mxu0 0
    %1671 = vmatmul.mubr.bf16.gmra.mrb[0].mxu0 %v1537
    %v1672 = vpop.f32.mrb[0].mxu0
    %v1673 = vadd.f32 %v1572, %v1672
    %v1674 = vpop.f32.mrb[0].mxu0
    %v1675 = vpop.f32.mrb[0].mxu0
    %v1676 = vadd.f32 %v1572, %v1675
    %v1677 = vpop.f32.mrb[0].mxu0
    %1678 = vmatprep.mubr.bf16.mxu0 0
    %1679 = vmatmul.mubr.bf16.gmra.mrb[0].mxu0 %v1538
    %v1680 = vpop.f32.mrb[0].mxu0
    %v1681 = vadd.f32 %v1572, %v1680
    %v1682 = vpop.f32.mrb[0].mxu0
    %v1683 = vpop.f32.mrb[0].mxu0
    %v1684 = vadd.f32 %v1572, %v1683
    %v1685 = vpop.f32.mrb[0].mxu0
    %1686 = vmatprep.mubr.bf16.mxu0 0
    %1687 = vmatmul.mubr.bf16.gmra.mrb[0].mxu0 %v1539
    %v1688 = vpop.f32.mrb[0].mxu0
    %v1689 = vadd.f32 %v1572, %v1688
    %v1690 = vpop.f32.mrb[0].mxu0
    %v1691 = vpop.f32.mrb[0].mxu0
    %v1692 = vadd.f32 %v1572, %v1691
    %v1693 = vpop.f32.mrb[0].mxu0
    %1694 = vmatprep.mubr.bf16.mxu0 0
    %1695 = vmatmul.mubr.bf16.gmra.mrb[0].mxu0 %v1540
    %v1696 = vpop.f32.mrb[0].mxu0
    %v1697 = vadd.f32 %v1572, %v1696
    %v1698 = vpop.f32.mrb[0].mxu0
    %v1699 = vpop.f32.mrb[0].mxu0
    %v1700 = vadd.f32 %v1572, %v1699
    %v1701 = vpop.f32.mrb[0].mxu0
    %1702 = vmatprep.mubr.bf16.mxu0 0
    %1703 = vmatmul.mubr.bf16.gmra.mrb[0].mxu0 %v1541
    %v1704 = vpop.f32.mrb[0].mxu0
    %v1705 = vadd.f32 %v1572, %v1704
    %v1706 = vpop.f32.mrb[0].mxu0
    %v1707 = vpop.f32.mrb[0].mxu0
    %v1708 = vadd.f32 %v1572, %v1707
    %v1709 = vpop.f32.mrb[0].mxu0
    %1710 = vmatprep.mubr.bf16.mxu0 0
    %1711 = vmatmul.mubr.bf16.gmra.mrb[0].mxu0 %v1542
    %v1712 = vpop.f32.mrb[0].mxu0
    %v1713 = vadd.f32 %v1572, %v1712
    %v1714 = vpop.f32.mrb[0].mxu0
    %v1715 = vpop.f32.mrb[0].mxu0
    %v1716 = vadd.f32 %v1572, %v1715
    %v1717 = vpop.f32.mrb[0].mxu0
    %1718 = vmatprep.mubr.bf16.mxu0 0
    %1719 = vmatmul.mubr.bf16.gmra.mrb[0].mxu0 %v1543
    %v1720 = vpop.f32.mrb[0].mxu0
    %v1721 = vadd.f32 %v1572, %v1720
    %v1722 = vpop.f32.mrb[0].mxu0
    %v1723 = vpop.f32.mrb[0].mxu0
    %v1724 = vadd.f32 %v1572, %v1723
    %v1725 = vpop.f32.mrb[0].mxu0
    %1726 = vmatprep.mubr.bf16.mxu0 0
    %1727 = vmatmul.mubr.bf16.gmra.mrb[0].mxu0 %v1544
    %v1728 = vpop.f32.mrb[0].mxu0
    %v1729 = vadd.f32 %v1572, %v1728
    %v1730 = vpop.f32.mrb[0].mxu0
    %v1731 = vpop.f32.mrb[0].mxu0
    %v1732 = vadd.f32 %v1572, %v1731
    %v1733 = vpop.f32.mrb[0].mxu0
    %1734 = vmatprep.mubr.bf16.mxu0 0
    %1735 = vmatmul.mubr.bf16.gmra.mrb[0].mxu0 %v1545
    %v1736 = vpop.f32.mrb[0].mxu0
    %v1737 = vadd.f32 %v1572, %v1736
    %v1738 = vpop.f32.mrb[0].mxu0
    %v1739 = vpop.f32.mrb[0].mxu0
    %v1740 = vadd.f32 %v1572, %v1739
    %v1741 = vpop.f32.mrb[0].mxu0
    %1742 = vmatprep.mubr.bf16.mxu0 0
    %1743 = vmatmul.mubr.bf16.gmra.mrb[0].mxu0 %v1546
    %v1744 = vpop.f32.mrb[0].mxu0
    %v1745 = vadd.f32 %v1572, %v1744
    %v1746 = vpop.f32.mrb[0].mxu0
    %v1747 = vpop.f32.mrb[0].mxu0
    %v1748 = vadd.f32 %v1572, %v1747
    %v1749 = vpop.f32.mrb[0].mxu0
    %1750 = vmatprep.mubr.bf16.mxu0 0
    %1751 = vmatmul.mubr.bf16.gmra.mrb[0].mxu0 %v1547
    %v1752 = vpop.f32.mrb[0].mxu0
    %v1753 = vadd.f32 %v1572, %v1752
    %v1754 = vpop.f32.mrb[0].mxu0
    %v1755 = vpop.f32.mrb[0].mxu0
    %v1756 = vadd.f32 %v1572, %v1755
    %v1757 = vpop.f32.mrb[0].mxu0
    %1758 = vmatprep.mubr.bf16.mxu0 0
    %1759 = vmatmul.mubr.bf16.gmra.mrb[0].mxu0 %v1548
    %v1760 = vpop.f32.mrb[0].mxu0
    %v1761 = vadd.f32 %v1572, %v1760
    %v1762 = vpop.f32.mrb[0].mxu0
    %v1763 = vpop.f32.mrb[0].mxu0
    %v1764 = vadd.f32 %v1572, %v1763
    %v1765 = vpop.f32.mrb[0].mxu0
    %1766 = vmatprep.mubr.bf16.mxu0 0
    %1767 = vmatmul.mubr.bf16.gmra.mrb[0].mxu0 %v1549
    %v1768 = vpop.f32.mrb[0].mxu0
    %v1769 = vadd.f32 %v1572, %v1768
    %v1770 = vpop.f32.mrb[0].mxu0
    %v1771 = vpop.f32.mrb[0].mxu0
    %v1772 = vadd.f32 %v1572, %v1771
    %v1773 = vpop.f32.mrb[0].mxu0
    %1774 = vmatprep.mubr.bf16.mxu0 0
    %1775 = vmatmul.mubr.bf16.gmra.mrb[0].mxu0 %v1550
    %v1776 = vpop.f32.mrb[0].mxu0
    %v1777 = vadd.f32 %v1572, %v1776
    %v1778 = vpop.f32.mrb[0].mxu0
    %v1779 = vpop.f32.mrb[0].mxu0
    %v1780 = vadd.f32 %v1572, %v1779
    %v1781 = vpop.f32.mrb[0].mxu0
    %1782 = vdwg.mxu0
    %v1783 = vtanh.pop %v1657
    %v1784 = vtanh.pop %v1660
    %v1785 = vtanh.pop %v1665
    %v1786 = vtanh.pop %v1668
    %v1787 = vtanh.pop %v1673
    %v1788 = vtanh.pop %v1676
    %v1789 = vtanh.pop %v1681
    %v1790 = vtanh.pop %v1684
    %v1791 = vtanh.pop %v1689
    %v1792 = vtanh.pop %v1692
    %v1793 = vtanh.pop %v1697
    %v1794 = vtanh.pop %v1700
    %v1795 = vtanh.pop %v1705
    %v1796 = vtanh.pop %v1708
    %v1797 = vtanh.pop %v1713
    %v1798 = vtanh.pop %v1716
    %v1799 = vtanh.pop %v1721
    %v1800 = vtanh.pop %v1724
    %v1801 = vtanh.pop %v1729
    %v1802 = vtanh.pop %v1732
    %v1803 = vtanh.pop %v1737
    %v1804 = vtanh.pop %v1740
    %v1805 = vtanh.pop %v1745
    %v1806 = vtanh.pop %v1748
    %v1807 = vtanh.pop %v1753
    %v1808 = vtanh.pop %v1756
    %v1809 = vtanh.pop %v1761
    %v1810 = vtanh.pop %v1764
    %v1811 = vtanh.pop %v1769
    %v1812 = vtanh.pop %v1772
    %v1813 = vtanh.pop %v1777
    %v1814 = vtanh.pop %v1780
    %v1815 = vmul.f32 %v1783, %v305
    %v1816 = vmul.f32 %v1784, %v306
    %v1817 = vmul.f32 %v1785, %v307
    %v1818 = vmul.f32 %v1786, %v308
    %v1819 = vmul.f32 %v1787, %v309
    %v1820 = vmul.f32 %v1788, %v310
    %v1821 = vmul.f32 %v1789, %v311
    %v1822 = vmul.f32 %v1790, %v312
    %v1823 = vmul.f32 %v1791, %v313
    %v1824 = vmul.f32 %v1792, %v314
    %v1825 = vmul.f32 %v1793, %v315
    %v1826 = vmul.f32 %v1794, %v316
    %v1827 = vmul.f32 %v1795, %v317
    %v1828 = vmul.f32 %v1796, %v318
    %v1829 = vmul.f32 %v1797, %v319
    %v1830 = vmul.f32 %v1798, %v320
    %v1831 = vmul.f32 %v1799, %v321
    %v1832 = vmul.f32 %v1800, %v322
    %v1833 = vmul.f32 %v1801, %v323
    %v1834 = vmul.f32 %v1802, %v324
    %v1835 = vmul.f32 %v1803, %v325
    %v1836 = vmul.f32 %v1804, %v326
    %v1837 = vmul.f32 %v1805, %v327
    %v1838 = vmul.f32 %v1806, %v328
    %v1839 = vmul.f32 %v1807, %v329
    %v1840 = vmul.f32 %v1808, %v330
    %v1841 = vmul.f32 %v1809, %v331
    %v1842 = vmul.f32 %v1810, %v332
    %v1843 = vmul.f32 %v1811, %v333
    %v1844 = vmul.f32 %v1812, %v334
    %v1845 = vmul.f32 %v1813, %v335
    %v1846 = vmul.f32 %v1814, %v336
    %v1847 = vadd.f32 %v1815, %v1816
    %v1848 = vadd.f32 %v1847, %v1817
    %v1849 = vadd.f32 %v1848, %v1818
    %v1850 = vadd.f32 %v1849, %v1819
    %v1851 = vadd.f32 %v1850, %v1820
    %v1852 = vadd.f32 %v1851, %v1821
    %v1853 = vadd.f32 %v1852, %v1822
    %v1854 = vadd.f32 %v1853, %v1823
    %v1855 = vadd.f32 %v1854, %v1824
    %v1856 = vadd.f32 %v1855, %v1825
    %v1857 = vadd.f32 %v1856, %v1826
    %v1858 = vadd.f32 %v1857, %v1827
    %v1859 = vadd.f32 %v1858, %v1828
    %v1860 = vadd.f32 %v1859, %v1829
    %v1861 = vadd.f32 %v1860, %v1830
    %v1862 = vadd.f32 %v1861, %v1831
    %v1863 = vadd.f32 %v1862, %v1832
    %v1864 = vadd.f32 %v1863, %v1833
    %v1865 = vadd.f32 %v1864, %v1834
    %v1866 = vadd.f32 %v1865, %v1835
    %v1867 = vadd.f32 %v1866, %v1836
    %v1868 = vadd.f32 %v1867, %v1837
    %v1869 = vadd.f32 %v1868, %v1838
    %v1870 = vadd.f32 %v1869, %v1839
    %v1871 = vadd.f32 %v1870, %v1840
    %v1872 = vadd.f32 %v1871, %v1841
    %v1873 = vadd.f32 %v1872, %v1842
    %v1874 = vadd.f32 %v1873, %v1843
    %v1875 = vadd.f32 %v1874, %v1844
    %v1876 = vadd.f32 %v1875, %v1845
    %v1877 = vadd.f32 %v1876, %v1846
    %v1878 = vrot.slane %v1877, 4
    %v1879 = vadd.f32 %v1877, %v1878
    %v1880 = vrot.slane %v1879, 2
    %v1881 = vadd.f32 %v1879, %v1880
    %v1882 = vrot.slane %v1881, 1
    %v1883 = vadd.f32 %v1881, %v1882
    %v1884 = vmul.f32 %v1883, 0.004
    %v1885 = vsub.f32 %v1783, %v1884
    %v1886 = vsub.f32 %v1784, %v1884
    %v1887 = vsub.f32 %v1785, %v1884
    %v1888 = vsub.f32 %v1786, %v1884
    %v1889 = vsub.f32 %v1787, %v1884
    %v1890 = vsub.f32 %v1788, %v1884
    %v1891 = vsub.f32 %v1789, %v1884
    %v1892 = vsub.f32 %v1790, %v1884
    %v1893 = vsub.f32 %v1791, %v1884
    %v1894 = vsub.f32 %v1792, %v1884
    %v1895 = vsub.f32 %v1793, %v1884
    %v1896 = vsub.f32 %v1794, %v1884
    %v1897 = vsub.f32 %v1795, %v1884
    %v1898 = vsub.f32 %v1796, %v1884
    %v1899 = vsub.f32 %v1797, %v1884
    %v1900 = vsub.f32 %v1798, %v1884
    %v1901 = vsub.f32 %v1799, %v1884
    %v1902 = vsub.f32 %v1800, %v1884
    %v1903 = vsub.f32 %v1801, %v1884
    %v1904 = vsub.f32 %v1802, %v1884
    %v1905 = vsub.f32 %v1803, %v1884
    %v1906 = vsub.f32 %v1804, %v1884
    %v1907 = vsub.f32 %v1805, %v1884
    %v1908 = vsub.f32 %v1806, %v1884
    %v1909 = vsub.f32 %v1807, %v1884
    %v1910 = vsub.f32 %v1808, %v1884
    %v1911 = vsub.f32 %v1809, %v1884
    %v1912 = vsub.f32 %v1810, %v1884
    %v1913 = vsub.f32 %v1811, %v1884
    %v1914 = vsub.f32 %v1812, %v1884
    %v1915 = vsub.f32 %v1813, %v1884
    %v1916 = vsub.f32 %v1814, %v1884
    %v1917 = vmul.f32 %v1885, %v305
    %v1918 = vmul.f32 %v1886, %v306
    %v1919 = vmul.f32 %v1887, %v307
    %v1920 = vmul.f32 %v1888, %v308
    %v1921 = vmul.f32 %v1889, %v309
    %v1922 = vmul.f32 %v1890, %v310
    %v1923 = vmul.f32 %v1891, %v311
    %v1924 = vmul.f32 %v1892, %v312
    %v1925 = vmul.f32 %v1893, %v313
    %v1926 = vmul.f32 %v1894, %v314
    %v1927 = vmul.f32 %v1895, %v315
    %v1928 = vmul.f32 %v1896, %v316
    %v1929 = vmul.f32 %v1897, %v317
    %v1930 = vmul.f32 %v1898, %v318
    %v1931 = vmul.f32 %v1899, %v319
    %v1932 = vmul.f32 %v1900, %v320
    %v1933 = vmul.f32 %v1901, %v321
    %v1934 = vmul.f32 %v1902, %v322
    %v1935 = vmul.f32 %v1903, %v323
    %v1936 = vmul.f32 %v1904, %v324
    %v1937 = vmul.f32 %v1905, %v325
    %v1938 = vmul.f32 %v1906, %v326
    %v1939 = vmul.f32 %v1907, %v327
    %v1940 = vmul.f32 %v1908, %v328
    %v1941 = vmul.f32 %v1909, %v329
    %v1942 = vmul.f32 %v1910, %v330
    %v1943 = vmul.f32 %v1911, %v331
    %v1944 = vmul.f32 %v1912, %v332
    %v1945 = vmul.f32 %v1913, %v333
    %v1946 = vmul.f32 %v1914, %v334
    %v1947 = vmul.f32 %v1915, %v335
    %v1948 = vmul.f32 %v1916, %v336
    %v1949 = vmul.f32 %v1917, %v1917
    %v1950 = vmul.f32 %v1918, %v1918
    %v1951 = vmul.f32 %v1919, %v1919
    %v1952 = vmul.f32 %v1920, %v1920
    %v1953 = vmul.f32 %v1921, %v1921
    %v1954 = vmul.f32 %v1922, %v1922
    %v1955 = vmul.f32 %v1923, %v1923
    %v1956 = vmul.f32 %v1924, %v1924
    %v1957 = vmul.f32 %v1925, %v1925
    %v1958 = vmul.f32 %v1926, %v1926
    %v1959 = vmul.f32 %v1927, %v1927
    %v1960 = vmul.f32 %v1928, %v1928
    %v1961 = vmul.f32 %v1929, %v1929
    %v1962 = vmul.f32 %v1930, %v1930
    %v1963 = vmul.f32 %v1931, %v1931
    %v1964 = vmul.f32 %v1932, %v1932
    %v1965 = vmul.f32 %v1933, %v1933
    %v1966 = vmul.f32 %v1934, %v1934
    %v1967 = vmul.f32 %v1935, %v1935
    %v1968 = vmul.f32 %v1936, %v1936
    %v1969 = vmul.f32 %v1937, %v1937
    %v1970 = vmul.f32 %v1938, %v1938
    %v1971 = vmul.f32 %v1939, %v1939
    %v1972 = vmul.f32 %v1940, %v1940
    %v1973 = vmul.f32 %v1941, %v1941
    %v1974 = vmul.f32 %v1942, %v1942
    %v1975 = vmul.f32 %v1943, %v1943
    %v1976 = vmul.f32 %v1944, %v1944
    %v1977 = vmul.f32 %v1945, %v1945
    %v1978 = vmul.f32 %v1946, %v1946
    %v1979 = vmul.f32 %v1947, %v1947
    %v1980 = vmul.f32 %v1948, %v1948
    %v1981 = vadd.f32 %v1949, %v1950
    %v1982 = vadd.f32 %v1981, %v1951
    %v1983 = vadd.f32 %v1982, %v1952
    %v1984 = vadd.f32 %v1983, %v1953
    %v1985 = vadd.f32 %v1984, %v1954
    %v1986 = vadd.f32 %v1985, %v1955
    %v1987 = vadd.f32 %v1986, %v1956
    %v1988 = vadd.f32 %v1987, %v1957
    %v1989 = vadd.f32 %v1988, %v1958
    %v1990 = vadd.f32 %v1989, %v1959
    %v1991 = vadd.f32 %v1990, %v1960
    %v1992 = vadd.f32 %v1991, %v1961
    %v1993 = vadd.f32 %v1992, %v1962
    %v1994 = vadd.f32 %v1993, %v1963
    %v1995 = vadd.f32 %v1994, %v1964
    %v1996 = vadd.f32 %v1995, %v1965
    %v1997 = vadd.f32 %v1996, %v1966
    %v1998 = vadd.f32 %v1997, %v1967
    %v1999 = vadd.f32 %v1998, %v1968
    %v2000 = vadd.f32 %v1999, %v1969
    %v2001 = vadd.f32 %v2000, %v1970
    %v2002 = vadd.f32 %v2001, %v1971
    %v2003 = vadd.f32 %v2002, %v1972
    %v2004 = vadd.f32 %v2003, %v1973
    %v2005 = vadd.f32 %v2004, %v1974
    %v2006 = vadd.f32 %v2005, %v1975
    %v2007 = vadd.f32 %v2006, %v1976
    %v2008 = vadd.f32 %v2007, %v1977
    %v2009 = vadd.f32 %v2008, %v1978
    %v2010 = vadd.f32 %v2009, %v1979
    %v2011 = vadd.f32 %v2010, %v1980
    %v2012 = vrot.slane %v2011, 4
    %v2013 = vadd.f32 %v2011, %v2012
    %v2014 = vrot.slane %v2013, 2
    %v2015 = vadd.f32 %v2013, %v2014
    %v2016 = vrot.slane %v2015, 1
    %v2017 = vadd.f32 %v2015, %v2016
    %v2018 = vmul.f32 %v2017, 0.004
    %v2019 = vadd.f32 %v2018, 1e-05
    %v2020 = vrsqrt.pop %v2019
    %v2021 = vmul.f32 %v1885, %v2020
    %v2022 = vmul.f32 %v1886, %v2020
    %v2023 = vmul.f32 %v1887, %v2020
    %v2024 = vmul.f32 %v1888, %v2020
    %v2025 = vmul.f32 %v1889, %v2020
    %v2026 = vmul.f32 %v1890, %v2020
    %v2027 = vmul.f32 %v1891, %v2020
    %v2028 = vmul.f32 %v1892, %v2020
    %v2029 = vmul.f32 %v1893, %v2020
    %v2030 = vmul.f32 %v1894, %v2020
    %v2031 = vmul.f32 %v1895, %v2020
    %v2032 = vmul.f32 %v1896, %v2020
    %v2033 = vmul.f32 %v1897, %v2020
    %v2034 = vmul.f32 %v1898, %v2020
    %v2035 = vmul.f32 %v1899, %v2020
    %v2036 = vmul.f32 %v1900, %v2020
    %v2037 = vmul.f32 %v1901, %v2020
    %v2038 = vmul.f32 %v1902, %v2020
    %v2039 = vmul.f32 %v1903, %v2020
    %v2040 = vmul.f32 %v1904, %v2020
    %v2041 = vmul.f32 %v1905, %v2020
    %v2042 = vmul.f32 %v1906, %v2020
    %v2043 = vmul.f32 %v1907, %v2020
    %v2044 = vmul.f32 %v1908, %v2020
    %v2045 = vmul.f32 %v1909, %v2020
    %v2046 = vmul.f32 %v1910, %v2020
    %v2047 = vmul.f32 %v1911, %v2020
    %v2048 = vmul.f32 %v1912, %v2020
    %v2049 = vmul.f32 %v1913, %v2020
    %v2050 = vmul.f32 %v1914, %v2020
    %v2051 = vmul.f32 %v1915, %v2020
    %v2052 = vmul.f32 %v1916, %v2020
    %v2053 = vmul.f32 %v2021, %v881
    %v2054 = vmul.f32 %v2022, %v881
    %v2055 = vmul.f32 %v2023, %v881
    %v2056 = vmul.f32 %v2024, %v881
    %v2057 = vmul.f32 %v2025, %v881
    %v2058 = vmul.f32 %v2026, %v881
    %v2059 = vmul.f32 %v2027, %v881
    %v2060 = vmul.f32 %v2028, %v881
    %v2061 = vmul.f32 %v2029, %v881
    %v2062 = vmul.f32 %v2030, %v881
    %v2063 = vmul.f32 %v2031, %v881
    %v2064 = vmul.f32 %v2032, %v881
    %v2065 = vmul.f32 %v2033, %v881
    %v2066 = vmul.f32 %v2034, %v881
    %v2067 = vmul.f32 %v2035, %v881
    %v2068 = vmul.f32 %v2036, %v881
    %v2069 = vmul.f32 %v2037, %v881
    %v2070 = vmul.f32 %v2038, %v881
    %v2071 = vmul.f32 %v2039, %v881
    %v2072 = vmul.f32 %v2040, %v881
    %v2073 = vmul.f32 %v2041, %v881
    %v2074 = vmul.f32 %v2042, %v881
    %v2075 = vmul.f32 %v2043, %v881
    %v2076 = vmul.f32 %v2044, %v881
    %v2077 = vmul.f32 %v2045, %v881
    %v2078 = vmul.f32 %v2046, %v881
    %v2079 = vmul.f32 %v2047, %v881
    %v2080 = vmul.f32 %v2048, %v881
    %v2081 = vmul.f32 %v2049, %v881
    %v2082 = vmul.f32 %v2050, %v881
    %v2083 = vmul.f32 %v2051, %v881
    %v2084 = vmul.f32 %v2052, %v881
    %v2085 = vadd.f32 %v2053, %v919
    %v2086 = vadd.f32 %v2054, %v919
    %v2087 = vadd.f32 %v2055, %v919
    %v2088 = vadd.f32 %v2056, %v919
    %v2089 = vadd.f32 %v2057, %v919
    %v2090 = vadd.f32 %v2058, %v919
    %v2091 = vadd.f32 %v2059, %v919
    %v2092 = vadd.f32 %v2060, %v919
    %v2093 = vadd.f32 %v2061, %v919
    %v2094 = vadd.f32 %v2062, %v919
    %v2095 = vadd.f32 %v2063, %v919
    %v2096 = vadd.f32 %v2064, %v919
    %v2097 = vadd.f32 %v2065, %v919
    %v2098 = vadd.f32 %v2066, %v919
    %v2099 = vadd.f32 %v2067, %v919
    %v2100 = vadd.f32 %v2068, %v919
    %v2101 = vadd.f32 %v2069, %v919
    %v2102 = vadd.f32 %v2070, %v919
    %v2103 = vadd.f32 %v2071, %v919
    %v2104 = vadd.f32 %v2072, %v919
    %v2105 = vadd.f32 %v2073, %v919
    %v2106 = vadd.f32 %v2074, %v919
    %v2107 = vadd.f32 %v2075, %v919
    %v2108 = vadd.f32 %v2076, %v919
    %v2109 = vadd.f32 %v2077, %v919
    %v2110 = vadd.f32 %v2078, %v919
    %v2111 = vadd.f32 %v2079, %v919
    %v2112 = vadd.f32 %v2080, %v919
    %v2113 = vadd.f32 %v2081, %v919
    %v2114 = vadd.f32 %v2082, %v919
    %v2115 = vadd.f32 %v2083, %v919
    %v2116 = vadd.f32 %v2084, %v919
    %v2117 = vpack.c.bf16 %v2086, %v2085
    %v2118 = vpack.c.bf16 %v2088, %v2087
    %v2119 = vpack.c.bf16 %v2090, %v2089
    %v2120 = vpack.c.bf16 %v2092, %v2091
    %v2121 = vpack.c.bf16 %v2094, %v2093
    %v2122 = vpack.c.bf16 %v2096, %v2095
    %v2123 = vpack.c.bf16 %v2098, %v2097
    %v2124 = vpack.c.bf16 %v2100, %v2099
    %v2125 = vpack.c.bf16 %v2102, %v2101
    %v2126 = vpack.c.bf16 %v2104, %v2103
    %v2127 = vpack.c.bf16 %v2106, %v2105
    %v2128 = vpack.c.bf16 %v2108, %v2107
    %v2129 = vpack.c.bf16 %v2110, %v2109
    %v2130 = vpack.c.bf16 %v2112, %v2111
    %v2131 = vpack.c.bf16 %v2114, %v2113
    %v2132 = vpack.c.bf16 %v2116, %v2115
    %v2133 = vld [vmem:[#allocation17] sm:$0xf]
    %v2134 = vld [vmem:[#allocation17 + $0x4] sm:$0xf]
    %v2135 = vld [vmem:[#allocation17 + $0x8] sm:$0xf]
    %v2136 = vld [vmem:[#allocation17 + $0xc] sm:$0xf]
    %v2137 = vld [vmem:[#allocation17 + $0x10] sm:$0xf]
    %v2138 = vld [vmem:[#allocation17 + $0x14] sm:$0xf]
    %v2139 = vld [vmem:[#allocation17 + $0x18] sm:$0xf]
    %v2140 = vld [vmem:[#allocation17 + $0x1c] sm:$0xf]
    %v2141 = vld [vmem:[#allocation17 + $0x20] sm:$0xf]
    %v2142 = vld [vmem:[#allocation17 + $0x24] sm:$0xf]
    %v2143 = vld [vmem:[#allocation17 + $0x28] sm:$0xf]
    %v2144 = vld [vmem:[#allocation17 + $0x2c] sm:$0xf]
    %v2145 = vld [vmem:[#allocation17 + $0x30] sm:$0xf]
    %v2146 = vld [vmem:[#allocation17 + $0x34] sm:$0xf]
    %v2147 = vld [vmem:[#allocation17 + $0x38] sm:$0xf]
    %v2148 = vld [vmem:[#allocation17 + $0x3c] sm:$0xf]
    %v2149 = vld [vmem:[#allocation19] sm:$0x1]
    %v2151 = vlaneseq
    %v2152 = vshrl.u32 %v2151, 7
    %v2153 = vsub.s32 0, %v2152
    %v2154 = vrot.slane %v2149, %v2153
    %v2172 = vunpack.c.l.b16 %v2133
    %v2173 = vunpack.c.l.b16 %v2134
    %v2174 = vunpack.c.l.b16 %v2135
    %v2175 = vunpack.c.l.b16 %v2136
    %v2176 = vunpack.c.l.b16 %v2137
    %v2177 = vunpack.c.l.b16 %v2138
    %v2178 = vunpack.c.l.b16 %v2139
    %v2179 = vunpack.c.l.b16 %v2140
    %v2180 = vunpack.c.l.b16 %v2141
    %v2181 = vunpack.c.l.b16 %v2142
    %v2182 = vunpack.c.l.b16 %v2143
    %v2183 = vunpack.c.l.b16 %v2144
    %v2184 = vunpack.c.l.b16 %v2145
    %v2185 = vunpack.c.l.b16 %v2146
    %v2186 = vunpack.c.l.b16 %v2147
    %v2187 = vunpack.c.l.b16 %v2148
    %v2188 = vpack.c.b16 %v2173, %v2172
    %v2189 = vpack.c.b16 %v2175, %v2174
    %v2190 = vpack.c.b16 %v2177, %v2176
    %v2191 = vpack.c.b16 %v2179, %v2178
    %v2192 = vpack.c.b16 %v2181, %v2180
    %v2193 = vpack.c.b16 %v2183, %v2182
    %v2194 = vpack.c.b16 %v2185, %v2184
    %v2195 = vpack.c.b16 %v2187, %v2186
    %2204 = vmatprep.subr.bf16.mxu0 0
    %2205 = vmatpush1.bf16.msra.mxu0 %v2188
    %2206 = vmatprep.subr.bf16.mxu0 0
    %2207 = vmatpush1.bf16.msra.mxu0 %v2189
    %2208 = vmatprep.subr.bf16.mxu0 0
    %2209 = vmatpush1.bf16.msra.mxu0 %v2190
    %2210 = vmatprep.subr.bf16.mxu0 0
    %2211 = vmatpush1.bf16.msra.mxu0 %v2191
    %2212 = vmatprep.subr.bf16.mxu0 0
    %2213 = vmatpush1.bf16.msra.mxu0 %v2192
    %2214 = vmatprep.subr.bf16.mxu0 0
    %2215 = vmatpush1.bf16.msra.mxu0 %v2193
    %2216 = vmatprep.subr.bf16.mxu0 0
    %2217 = vmatpush1.bf16.msra.mxu0 %v2194
    %2218 = vmatprep.subr.bf16.mxu0 0
    %2219 = vmatpush1.bf16.msra.mxu0 %v2195
    %2220 = vmatprep.subr.bf16.mxu0 0
    %2221 = vmatpush1.bf16.msra.mxu0 0
    %2222 = vmatprep.subr.bf16.mxu0 0
    %2223 = vmatpush1.bf16.msra.mxu0 0
    %2224 = vmatprep.subr.bf16.mxu0 0
    %2225 = vmatpush1.bf16.msra.mxu0 0
    %2226 = vmatprep.subr.bf16.mxu0 0
    %2227 = vmatpush1.bf16.msra.mxu0 0
    %2228 = vmatprep.subr.bf16.mxu0 0
    %2229 = vmatpush1.bf16.msra.mxu0 0
    %2230 = vmatprep.subr.bf16.mxu0 0
    %2231 = vmatpush1.bf16.msra.mxu0 0
    %2232 = vmatprep.subr.bf16.mxu0 0
    %2233 = vmatpush1.bf16.msra.mxu0 0
    %2234 = vmatprep.subr.bf16.mxu0 0
    %2235 = vmatpush1.bf16.msra.mxu0 0
    %2236 = vmatprep.mubr.bf16.mxu0 0
    %2237 = vmatmul.mubr.bf16.gmra.mrb[0].mxu0 %v2117
    %v2238 = vpop.f32.mrb[0].mxu0
    %v2239 = vadd.f32 %v2154, %v2238
    %v2240 = vpop.f32.mrb[0].mxu0
    %v2241 = vpop.f32.mrb[0].mxu0
    %v2242 = vadd.f32 %v2154, %v2241
    %v2243 = vpop.f32.mrb[0].mxu0
    %2244 = vmatprep.mubr.bf16.mxu0 0
    %2245 = vmatmul.mubr.bf16.gmra.mrb[0].mxu0 %v2118
    %v2246 = vpop.f32.mrb[0].mxu0
    %v2247 = vadd.f32 %v2154, %v2246
    %v2248 = vpop.f32.mrb[0].mxu0
    %v2249 = vpop.f32.mrb[0].mxu0
    %v2250 = vadd.f32 %v2154, %v2249
    %v2251 = vpop.f32.mrb[0].mxu0
    %2252 = vmatprep.mubr.bf16.mxu0 0
    %2253 = vmatmul.mubr.bf16.gmra.mrb[0].mxu0 %v2119
    %v2254 = vpop.f32.mrb[0].mxu0
    %v2255 = vadd.f32 %v2154, %v2254
    %v2256 = vpop.f32.mrb[0].mxu0
    %v2257 = vpop.f32.mrb[0].mxu0
    %v2258 = vadd.f32 %v2154, %v2257
    %v2259 = vpop.f32.mrb[0].mxu0
    %2260 = vmatprep.mubr.bf16.mxu0 0
    %2261 = vmatmul.mubr.bf16.gmra.mrb[0].mxu0 %v2120
    %v2262 = vpop.f32.mrb[0].mxu0
    %v2263 = vadd.f32 %v2154, %v2262
    %v2264 = vpop.f32.mrb[0].mxu0
    %v2265 = vpop.f32.mrb[0].mxu0
    %v2266 = vadd.f32 %v2154, %v2265
    %v2267 = vpop.f32.mrb[0].mxu0
    %2268 = vmatprep.mubr.bf16.mxu0 0
    %2269 = vmatmul.mubr.bf16.gmra.mrb[0].mxu0 %v2121
    %v2270 = vpop.f32.mrb[0].mxu0
    %v2271 = vadd.f32 %v2154, %v2270
    %v2272 = vpop.f32.mrb[0].mxu0
    %v2273 = vpop.f32.mrb[0].mxu0
    %v2274 = vadd.f32 %v2154, %v2273
    %v2275 = vpop.f32.mrb[0].mxu0
    %2276 = vmatprep.mubr.bf16.mxu0 0
    %2277 = vmatmul.mubr.bf16.gmra.mrb[0].mxu0 %v2122
    %v2278 = vpop.f32.mrb[0].mxu0
    %v2279 = vadd.f32 %v2154, %v2278
    %v2280 = vpop.f32.mrb[0].mxu0
    %v2281 = vpop.f32.mrb[0].mxu0
    %v2282 = vadd.f32 %v2154, %v2281
    %v2283 = vpop.f32.mrb[0].mxu0
    %2284 = vmatprep.mubr.bf16.mxu0 0
    %2285 = vmatmul.mubr.bf16.gmra.mrb[0].mxu0 %v2123
    %v2286 = vpop.f32.mrb[0].mxu0
    %v2287 = vadd.f32 %v2154, %v2286
    %v2288 = vpop.f32.mrb[0].mxu0
    %v2289 = vpop.f32.mrb[0].mxu0
    %v2290 = vadd.f32 %v2154, %v2289
    %v2291 = vpop.f32.mrb[0].mxu0
    %2292 = vmatprep.mubr.bf16.mxu0 0
    %2293 = vmatmul.mubr.bf16.gmra.mrb[0].mxu0 %v2124
    %v2294 = vpop.f32.mrb[0].mxu0
    %v2295 = vadd.f32 %v2154, %v2294
    %v2296 = vpop.f32.mrb[0].mxu0
    %v2297 = vpop.f32.mrb[0].mxu0
    %v2298 = vadd.f32 %v2154, %v2297
    %v2299 = vpop.f32.mrb[0].mxu0
    %2300 = vmatprep.mubr.bf16.mxu0 0
    %2301 = vmatmul.mubr.bf16.gmra.mrb[0].mxu0 %v2125
    %v2302 = vpop.f32.mrb[0].mxu0
    %v2303 = vadd.f32 %v2154, %v2302
    %v2304 = vpop.f32.mrb[0].mxu0
    %v2305 = vpop.f32.mrb[0].mxu0
    %v2306 = vadd.f32 %v2154, %v2305
    %v2307 = vpop.f32.mrb[0].mxu0
    %2308 = vmatprep.mubr.bf16.mxu0 0
    %2309 = vmatmul.mubr.bf16.gmra.mrb[0].mxu0 %v2126
    %v2310 = vpop.f32.mrb[0].mxu0
    %v2311 = vadd.f32 %v2154, %v2310
    %v2312 = vpop.f32.mrb[0].mxu0
    %v2313 = vpop.f32.mrb[0].mxu0
    %v2314 = vadd.f32 %v2154, %v2313
    %v2315 = vpop.f32.mrb[0].mxu0
    %2316 = vmatprep.mubr.bf16.mxu0 0
    %2317 = vmatmul.mubr.bf16.gmra.mrb[0].mxu0 %v2127
    %v2318 = vpop.f32.mrb[0].mxu0
    %v2319 = vadd.f32 %v2154, %v2318
    %v2320 = vpop.f32.mrb[0].mxu0
    %v2321 = vpop.f32.mrb[0].mxu0
    %v2322 = vadd.f32 %v2154, %v2321
    %v2323 = vpop.f32.mrb[0].mxu0
    %2324 = vmatprep.mubr.bf16.mxu0 0
    %2325 = vmatmul.mubr.bf16.gmra.mrb[0].mxu0 %v2128
    %v2326 = vpop.f32.mrb[0].mxu0
    %v2327 = vadd.f32 %v2154, %v2326
    %v2328 = vpop.f32.mrb[0].mxu0
    %v2329 = vpop.f32.mrb[0].mxu0
    %v2330 = vadd.f32 %v2154, %v2329
    %v2331 = vpop.f32.mrb[0].mxu0
    %2332 = vmatprep.mubr.bf16.mxu0 0
    %2333 = vmatmul.mubr.bf16.gmra.mrb[0].mxu0 %v2129
    %v2334 = vpop.f32.mrb[0].mxu0
    %v2335 = vadd.f32 %v2154, %v2334
    %v2336 = vpop.f32.mrb[0].mxu0
    %v2337 = vpop.f32.mrb[0].mxu0
    %v2338 = vadd.f32 %v2154, %v2337
    %v2339 = vpop.f32.mrb[0].mxu0
    %2340 = vmatprep.mubr.bf16.mxu0 0
    %2341 = vmatmul.mubr.bf16.gmra.mrb[0].mxu0 %v2130
    %v2342 = vpop.f32.mrb[0].mxu0
    %v2343 = vadd.f32 %v2154, %v2342
    %v2344 = vpop.f32.mrb[0].mxu0
    %v2345 = vpop.f32.mrb[0].mxu0
    %v2346 = vadd.f32 %v2154, %v2345
    %v2347 = vpop.f32.mrb[0].mxu0
    %2348 = vmatprep.mubr.bf16.mxu0 0
    %2349 = vmatmul.mubr.bf16.gmra.mrb[0].mxu0 %v2131
    %v2350 = vpop.f32.mrb[0].mxu0
    %v2351 = vadd.f32 %v2154, %v2350
    %v2352 = vpop.f32.mrb[0].mxu0
    %v2353 = vpop.f32.mrb[0].mxu0
    %v2354 = vadd.f32 %v2154, %v2353
    %v2355 = vpop.f32.mrb[0].mxu0
    %2356 = vmatprep.mubr.bf16.mxu0 0
    %2357 = vmatmul.mubr.bf16.gmra.mrb[0].mxu0 %v2132
    %v2358 = vpop.f32.mrb[0].mxu0
    %v2359 = vadd.f32 %v2154, %v2358
    %v2360 = vpop.f32.mrb[0].mxu0
    %v2361 = vpop.f32.mrb[0].mxu0
    %v2362 = vadd.f32 %v2154, %v2361
    %v2363 = vpop.f32.mrb[0].mxu0
    %2364 = vdwg.mxu0
    %v2365 = vtanh.pop %v2239
    %v2366 = vtanh.pop %v2242
    %v2367 = vtanh.pop %v2247
    %v2368 = vtanh.pop %v2250
    %v2369 = vtanh.pop %v2255
    %v2370 = vtanh.pop %v2258
    %v2371 = vtanh.pop %v2263
    %v2372 = vtanh.pop %v2266
    %v2373 = vtanh.pop %v2271
    %v2374 = vtanh.pop %v2274
    %v2375 = vtanh.pop %v2279
    %v2376 = vtanh.pop %v2282
    %v2377 = vtanh.pop %v2287
    %v2378 = vtanh.pop %v2290
    %v2379 = vtanh.pop %v2295
    %v2380 = vtanh.pop %v2298
    %v2381 = vtanh.pop %v2303
    %v2382 = vtanh.pop %v2306
    %v2383 = vtanh.pop %v2311
    %v2384 = vtanh.pop %v2314
    %v2385 = vtanh.pop %v2319
    %v2386 = vtanh.pop %v2322
    %v2387 = vtanh.pop %v2327
    %v2388 = vtanh.pop %v2330
    %v2389 = vtanh.pop %v2335
    %v2390 = vtanh.pop %v2338
    %v2391 = vtanh.pop %v2343
    %v2392 = vtanh.pop %v2346
    %v2393 = vtanh.pop %v2351
    %v2394 = vtanh.pop %v2354
    %v2395 = vtanh.pop %v2359
    %v2396 = vtanh.pop %v2362
    %v2397 = vpack.c.bf16 %v2366, %v2365
    %v2398 = vpack.c.bf16 %v2368, %v2367
    %v2399 = vpack.c.bf16 %v2370, %v2369
    %v2400 = vpack.c.bf16 %v2372, %v2371
    %v2401 = vpack.c.bf16 %v2374, %v2373
    %v2402 = vpack.c.bf16 %v2376, %v2375
    %v2403 = vpack.c.bf16 %v2378, %v2377
    %v2404 = vpack.c.bf16 %v2380, %v2379
    %v2405 = vpack.c.bf16 %v2382, %v2381
    %v2406 = vpack.c.bf16 %v2384, %v2383
    %v2407 = vpack.c.bf16 %v2386, %v2385
    %v2408 = vpack.c.bf16 %v2388, %v2387
    %v2409 = vpack.c.bf16 %v2390, %v2389
    %v2410 = vpack.c.bf16 %v2392, %v2391
    %v2411 = vpack.c.bf16 %v2394, %v2393
    %v2412 = vpack.c.bf16 %v2396, %v2395
    %v2413 = vld [vmem:[#allocation20] sm:$0xf]
    %v2414 = vld [vmem:[#allocation20 + $0x4] sm:$0xf]
    %v2415 = vld [vmem:[#allocation20 + $0x8] sm:$0xf]
    %v2416 = vld [vmem:[#allocation20 + $0xc] sm:$0xf]
    %v2417 = vld [vmem:[#allocation20 + $0x10] sm:$0xf]
    %v2418 = vld [vmem:[#allocation20 + $0x14] sm:$0xf]
    %v2419 = vld [vmem:[#allocation20 + $0x18] sm:$0xf]
    %v2420 = vld [vmem:[#allocation20 + $0x1c] sm:$0xf]
    %v2421 = vld [vmem:[#allocation20 + $0x20] sm:$0xf]
    %v2422 = vld [vmem:[#allocation20 + $0x24] sm:$0xf]
    %v2423 = vld [vmem:[#allocation20 + $0x28] sm:$0xf]
    %v2424 = vld [vmem:[#allocation20 + $0x2c] sm:$0xf]
    %v2425 = vld [vmem:[#allocation20 + $0x30] sm:$0xf]
    %v2426 = vld [vmem:[#allocation20 + $0x34] sm:$0xf]
    %v2427 = vld [vmem:[#allocation20 + $0x38] sm:$0xf]
    %v2428 = vld [vmem:[#allocation20 + $0x3c] sm:$0xf]
    %v2429 = vld [vmem:[#allocation22] sm:$0x1]
    %v2431 = vlaneseq
    %v2432 = vshrl.u32 %v2431, 7
    %v2433 = vsub.s32 0, %v2432
    %v2434 = vrot.slane %v2429, %v2433
    %v2452 = vunpack.c.l.b16 %v2413
    %v2453 = vunpack.c.l.b16 %v2414
    %v2454 = vunpack.c.l.b16 %v2415
    %v2455 = vunpack.c.l.b16 %v2416
    %v2456 = vunpack.c.l.b16 %v2417
    %v2457 = vunpack.c.l.b16 %v2418
    %v2458 = vunpack.c.l.b16 %v2419
    %v2459 = vunpack.c.l.b16 %v2420
    %v2460 = vunpack.c.l.b16 %v2421
    %v2461 = vunpack.c.l.b16 %v2422
    %v2462 = vunpack.c.l.b16 %v2423
    %v2463 = vunpack.c.l.b16 %v2424
    %v2464 = vunpack.c.l.b16 %v2425
    %v2465 = vunpack.c.l.b16 %v2426
    %v2466 = vunpack.c.l.b16 %v2427
    %v2467 = vunpack.c.l.b16 %v2428
    %v2468 = vpack.c.b16 %v2453, %v2452
    %v2469 = vpack.c.b16 %v2455, %v2454
    %v2470 = vpack.c.b16 %v2457, %v2456
    %v2471 = vpack.c.b16 %v2459, %v2458
    %v2472 = vpack.c.b16 %v2461, %v2460
    %v2473 = vpack.c.b16 %v2463, %v2462
    %v2474 = vpack.c.b16 %v2465, %v2464
    %v2475 = vpack.c.b16 %v2467, %v2466
    %2484 = vmatprep.subr.bf16.mxu0 0
    %2485 = vmatpush1.bf16.msra.mxu0 %v2468
    %2486 = vmatprep.subr.bf16.mxu0 0
    %2487 = vmatpush1.bf16.msra.mxu0 %v2469
    %2488 = vmatprep.subr.bf16.mxu0 0
    %2489 = vmatpush1.bf16.msra.mxu0 %v2470
    %2490 = vmatprep.subr.bf16.mxu0 0
    %2491 = vmatpush1.bf16.msra.mxu0 %v2471
    %2492 = vmatprep.subr.bf16.mxu0 0
    %2493 = vmatpush1.bf16.msra.mxu0 %v2472
    %2494 = vmatprep.subr.bf16.mxu0 0
    %2495 = vmatpush1.bf16.msra.mxu0 %v2473
    %2496 = vmatprep.subr.bf16.mxu0 0
    %2497 = vmatpush1.bf16.msra.mxu0 %v2474
    %2498 = vmatprep.subr.bf16.mxu0 0
    %2499 = vmatpush1.bf16.msra.mxu0 %v2475
    %2500 = vmatprep.subr.bf16.mxu0 0
    %2501 = vmatpush1.bf16.msra.mxu0 0
    %2502 = vmatprep.subr.bf16.mxu0 0
    %2503 = vmatpush1.bf16.msra.mxu0 0
    %2504 = vmatprep.subr.bf16.mxu0 0
    %2505 = vmatpush1.bf16.msra.mxu0 0
    %2506 = vmatprep.subr.bf16.mxu0 0
    %2507 = vmatpush1.bf16.msra.mxu0 0
    %2508 = vmatprep.subr.bf16.mxu0 0
    %2509 = vmatpush1.bf16.msra.mxu0 0
    %2510 = vmatprep.subr.bf16.mxu0 0
    %2511 = vmatpush1.bf16.msra.mxu0 0
    %2512 = vmatprep.subr.bf16.mxu0 0
    %2513 = vmatpush1.bf16.msra.mxu0 0
    %2514 = vmatprep.subr.bf16.mxu0 0
    %2515 = vmatpush1.bf16.msra.mxu0 0
    %2516 = vmatprep.mubr.bf16.mxu0 0
    %2517 = vmatmul.mubr.bf16.gmra.mrb[0].mxu0 %v2397
    %v2518 = vpop.f32.mrb[0].mxu0
    %v2519 = vadd.f32 %v2434, %v2518
    %v2520 = vpop.f32.mrb[0].mxu0
    %v2521 = vpop.f32.mrb[0].mxu0
    %v2522 = vadd.f32 %v2434, %v2521
    %v2523 = vpop.f32.mrb[0].mxu0
    %2524 = vmatprep.mubr.bf16.mxu0 0
    %2525 = vmatmul.mubr.bf16.gmra.mrb[0].mxu0 %v2398
    %v2526 = vpop.f32.mrb[0].mxu0
    %v2527 = vadd.f32 %v2434, %v2526
    %v2528 = vpop.f32.mrb[0].mxu0
    %v2529 = vpop.f32.mrb[0].mxu0
    %v2530 = vadd.f32 %v2434, %v2529
    %v2531 = vpop.f32.mrb[0].mxu0
    %2532 = vmatprep.mubr.bf16.mxu0 0
    %2533 = vmatmul.mubr.bf16.gmra.mrb[0].mxu0 %v2399
    %v2534 = vpop.f32.mrb[0].mxu0
    %v2535 = vadd.f32 %v2434, %v2534
    %v2536 = vpop.f32.mrb[0].mxu0
    %v2537 = vpop.f32.mrb[0].mxu0
    %v2538 = vadd.f32 %v2434, %v2537
    %v2539 = vpop.f32.mrb[0].mxu0
    %2540 = vmatprep.mubr.bf16.mxu0 0
    %2541 = vmatmul.mubr.bf16.gmra.mrb[0].mxu0 %v2400
    %v2542 = vpop.f32.mrb[0].mxu0
    %v2543 = vadd.f32 %v2434, %v2542
    %v2544 = vpop.f32.mrb[0].mxu0
    %v2545 = vpop.f32.mrb[0].mxu0
    %v2546 = vadd.f32 %v2434, %v2545
    %v2547 = vpop.f32.mrb[0].mxu0
    %2548 = vmatprep.mubr.bf16.mxu0 0
    %2549 = vmatmul.mubr.bf16.gmra.mrb[0].mxu0 %v2401
    %v2550 = vpop.f32.mrb[0].mxu0
    %v2551 = vadd.f32 %v2434, %v2550
    %v2552 = vpop.f32.mrb[0].mxu0
    %v2553 = vpop.f32.mrb[0].mxu0
    %v2554 = vadd.f32 %v2434, %v2553
    %v2555 = vpop.f32.mrb[0].mxu0
    %2556 = vmatprep.mubr.bf16.mxu0 0
    %2557 = vmatmul.mubr.bf16.gmra.mrb[0].mxu0 %v2402
    %v2558 = vpop.f32.mrb[0].mxu0
    %v2559 = vadd.f32 %v2434, %v2558
    %v2560 = vpop.f32.mrb[0].mxu0
    %v2561 = vpop.f32.mrb[0].mxu0
    %v2562 = vadd.f32 %v2434, %v2561
    %v2563 = vpop.f32.mrb[0].mxu0
    %2564 = vmatprep.mubr.bf16.mxu0 0
    %2565 = vmatmul.mubr.bf16.gmra.mrb[0].mxu0 %v2403
    %v2566 = vpop.f32.mrb[0].mxu0
    %v2567 = vadd.f32 %v2434, %v2566
    %v2568 = vpop.f32.mrb[0].mxu0
    %v2569 = vpop.f32.mrb[0].mxu0
    %v2570 = vadd.f32 %v2434, %v2569
    %v2571 = vpop.f32.mrb[0].mxu0
    %2572 = vmatprep.mubr.bf16.mxu0 0
    %2573 = vmatmul.mubr.bf16.gmra.mrb[0].mxu0 %v2404
    %v2574 = vpop.f32.mrb[0].mxu0
    %v2575 = vadd.f32 %v2434, %v2574
    %v2576 = vpop.f32.mrb[0].mxu0
    %v2577 = vpop.f32.mrb[0].mxu0
    %v2578 = vadd.f32 %v2434, %v2577
    %v2579 = vpop.f32.mrb[0].mxu0
    %2580 = vmatprep.mubr.bf16.mxu0 0
    %2581 = vmatmul.mubr.bf16.gmra.mrb[0].mxu0 %v2405
    %v2582 = vpop.f32.mrb[0].mxu0
    %v2583 = vadd.f32 %v2434, %v2582
    %v2584 = vpop.f32.mrb[0].mxu0
    %v2585 = vpop.f32.mrb[0].mxu0
    %v2586 = vadd.f32 %v2434, %v2585
    %v2587 = vpop.f32.mrb[0].mxu0
    %2588 = vmatprep.mubr.bf16.mxu0 0
    %2589 = vmatmul.mubr.bf16.gmra.mrb[0].mxu0 %v2406
    %v2590 = vpop.f32.mrb[0].mxu0
    %v2591 = vadd.f32 %v2434, %v2590
    %v2592 = vpop.f32.mrb[0].mxu0
    %v2593 = vpop.f32.mrb[0].mxu0
    %v2594 = vadd.f32 %v2434, %v2593
    %v2595 = vpop.f32.mrb[0].mxu0
    %2596 = vmatprep.mubr.bf16.mxu0 0
    %2597 = vmatmul.mubr.bf16.gmra.mrb[0].mxu0 %v2407
    %v2598 = vpop.f32.mrb[0].mxu0
    %v2599 = vadd.f32 %v2434, %v2598
    %v2600 = vpop.f32.mrb[0].mxu0
    %v2601 = vpop.f32.mrb[0].mxu0
    %v2602 = vadd.f32 %v2434, %v2601
    %v2603 = vpop.f32.mrb[0].mxu0
    %2604 = vmatprep.mubr.bf16.mxu0 0
    %2605 = vmatmul.mubr.bf16.gmra.mrb[0].mxu0 %v2408
    %v2606 = vpop.f32.mrb[0].mxu0
    %v2607 = vadd.f32 %v2434, %v2606
    %v2608 = vpop.f32.mrb[0].mxu0
    %v2609 = vpop.f32.mrb[0].mxu0
    %v2610 = vadd.f32 %v2434, %v2609
    %v2611 = vpop.f32.mrb[0].mxu0
    %2612 = vmatprep.mubr.bf16.mxu0 0
    %2613 = vmatmul.mubr.bf16.gmra.mrb[0].mxu0 %v2409
    %v2614 = vpop.f32.mrb[0].mxu0
    %v2615 = vadd.f32 %v2434, %v2614
    %v2616 = vpop.f32.mrb[0].mxu0
    %v2617 = vpop.f32.mrb[0].mxu0
    %v2618 = vadd.f32 %v2434, %v2617
    %v2619 = vpop.f32.mrb[0].mxu0
    %2620 = vmatprep.mubr.bf16.mxu0 0
    %2621 = vmatmul.mubr.bf16.gmra.mrb[0].mxu0 %v2410
    %v2622 = vpop.f32.mrb[0].mxu0
    %v2623 = vadd.f32 %v2434, %v2622
    %v2624 = vpop.f32.mrb[0].mxu0
    %v2625 = vpop.f32.mrb[0].mxu0
    %v2626 = vadd.f32 %v2434, %v2625
    %v2627 = vpop.f32.mrb[0].mxu0
    %2628 = vmatprep.mubr.bf16.mxu0 0
    %2629 = vmatmul.mubr.bf16.gmra.mrb[0].mxu0 %v2411
    %v2630 = vpop.f32.mrb[0].mxu0
    %v2631 = vadd.f32 %v2434, %v2630
    %v2632 = vpop.f32.mrb[0].mxu0
    %v2633 = vpop.f32.mrb[0].mxu0
    %v2634 = vadd.f32 %v2434, %v2633
    %v2635 = vpop.f32.mrb[0].mxu0
    %2636 = vmatprep.mubr.bf16.mxu0 0
    %2637 = vmatmul.mubr.bf16.gmra.mrb[0].mxu0 %v2412
    %v2638 = vpop.f32.mrb[0].mxu0
    %v2639 = vadd.f32 %v2434, %v2638
    %v2640 = vpop.f32.mrb[0].mxu0
    %v2641 = vpop.f32.mrb[0].mxu0
    %v2642 = vadd.f32 %v2434, %v2641
    %v2643 = vpop.f32.mrb[0].mxu0
    %2644 = vdwg.mxu0
    %2645 = vst [vmem:[#allocation23] sm:$0xff] %v2519
    %2646 = vst [vmem:[#allocation23 + $0x8] sm:$0xff] %v2522
    %2647 = vst [vmem:[#allocation23 + $0x10] sm:$0xff] %v2527
    %2648 = vst [vmem:[#allocation23 + $0x18] sm:$0xff] %v2530
    %2649 = vst [vmem:[#allocation23 + $0x20] sm:$0xff] %v2535
    %2650 = vst [vmem:[#allocation23 + $0x28] sm:$0xff] %v2538
    %2651 = vst [vmem:[#allocation23 + $0x30] sm:$0xff] %v2543
    %2652 = vst [vmem:[#allocation23 + $0x38] sm:$0xff] %v2546
    %2653 = vst [vmem:[#allocation23 + $0x40] sm:$0xff] %v2551
    %2654 = vst [vmem:[#allocation23 + $0x48] sm:$0xff] %v2554
    %2655 = vst [vmem:[#allocation23 + $0x50] sm:$0xff] %v2559
    %2656 = vst [vmem:[#allocation23 + $0x58] sm:$0xff] %v2562
    %2657 = vst [vmem:[#allocation23 + $0x60] sm:$0xff] %v2567
    %2658 = vst [vmem:[#allocation23 + $0x68] sm:$0xff] %v2570
    %2659 = vst [vmem:[#allocation23 + $0x70] sm:$0xff] %v2575
    %2660 = vst [vmem:[#allocation23 + $0x78] sm:$0xff] %v2578
    %2661 = vst [vmem:[#allocation23 + $0x80] sm:$0xff] %v2583
    %2662 = vst [vmem:[#allocation23 + $0x88] sm:$0xff] %v2586
    %2663 = vst [vmem:[#allocation23 + $0x90] sm:$0xff] %v2591
    %2664 = vst [vmem:[#allocation23 + $0x98] sm:$0xff] %v2594
    %2665 = vst [vmem:[#allocation23 + $0xa0] sm:$0xff] %v2599
    %2666 = vst [vmem:[#allocation23 + $0xa8] sm:$0xff] %v2602
    %2667 = vst [vmem:[#allocation23 + $0xb0] sm:$0xff] %v2607
    %2668 = vst [vmem:[#allocation23 + $0xb8] sm:$0xff] %v2610
    %2669 = vst [vmem:[#allocation23 + $0xc0] sm:$0xff] %v2615
    %2670 = vst [vmem:[#allocation23 + $0xc8] sm:$0xff] %v2618
    %2671 = vst [vmem:[#allocation23 + $0xd0] sm:$0xff] %v2623
    %2672 = vst [vmem:[#allocation23 + $0xd8] sm:$0xff] %v2626
    %2673 = vst [vmem:[#allocation23 + $0xe0] sm:$0xff] %v2631
    %2674 = vst [vmem:[#allocation23 + $0xe8] sm:$0xff] %v2634
    %2675 = vst [vmem:[#allocation23 + $0xf0] sm:$0xff] %v2639
    %2676 = vst [vmem:[#allocation23 + $0xf8] sm:$0xff] %v2642
    // Predicated region
    $region106: #{tpu_custom_call.1} parent=1 // pred_check
      _
    $region107: #{tpu_custom_call.1} parent=1 // pred_check_branch
      %2678 = sbr.rel (0) target = $region109
    $region108: #{tpu_custom_call.1} parent=1 // pred_region
      %s2680 = ssub.s32 4096, 4096
      %2681 = vsyncadd [#allocation4], %s2680
      %s2682 = sshll.u32 [#allocation23], 4
      %s2683 = int_to_ptr.vmem [resolvable:$true] %s2682
      %2688 = dma.vmem_to_hbm [thread:$0]  %s2683, 4096, %s13, [#allocation4], 128, 128, 8
    $region109: #{tpu_custom_call.1} parent=1 // pred_fallthru
      _
    // Predicated region
    $region110: #{tpu_custom_call.1} parent=1 // pred_check
      _
    $region111: #{tpu_custom_call.1} parent=1 // pred_check_branch
      %2690 = sbr.rel (0) target = $region113
    $region112: #{tpu_custom_call.1} parent=1 // pred_region
      %2691 = dma.done [#allocation4], 4096
    $region113: #{tpu_custom_call.1} parent=1 // pred_fallthru
      _
    %2692 = vsyncpa [#allocation3], 1
    %2693 = vsyncpa [#allocation6], 1
    %2694 = vsyncpa [#allocation9], 1
    %2695 = vsyncpa [#allocation12], 1
    %2696 = vsyncpa [#allocation15], 1
    %2697 = vsyncpa [#allocation18], 1
    %2698 = vsyncpa [#allocation21], 1
    %2699 = vsyncpa [#allocation4], 1

</llo_original>
